<compile_context>
chip_gen: v7x
topology: tpu7x:2x2x1
jax: 0.10.0
libtpu: 0.0.40
codegen_flags: <defaults>
</compile_context>

<pallas_src>
import numpy as np
import jax
import jax.numpy as jnp
from jax.experimental import pallas as pl
from jax.experimental.pallas import tpu as pltpu

# ----------------------------- hyperparameters (small) ---------------------------------
B = 2          # batch
C = 4          # num_channels
S = 8          # seq_len
P = 4          # pred_len
D = 32         # d_model
L = 2          # num_enc_layers
K = C * P      # true head output width (16)
KP = 32        # lane-padded head width written by the kernel
SC = S * C     # 32
DC = D * C     # 128
SD = S * D     # 256
EPS_REVIN = 1e-5
W_DTYPE = jnp.bfloat16     # MXU-input dtype for weights / activations (f32 accumulate)

_TANH_C = float(np.sqrt(2.0 / np.pi))


def _gelu(v):
    # tanh-approximation GELU (EUP-friendly); see TODO above re: exact erf form.
    return 0.5 * v * (1.0 + jnp.tanh(_TANH_C * (v + 0.044715 * v * v * v)))


# ------------------------- static slab layout (row offsets) -----------------------------
def _r16(n):
    return ((n + 15) // 16) * 16


def _layout(pieces):
    offs, r = {}, 0
    for name, rows in pieces:
        offs[name] = r
        r += _r16(rows)            # 16-row alignment => clean sublane offsets for bf16
    return offs, r


_N_PIECES = (
    [("A", SC)]
    + [p for l in range(L) for p in ((f"K2_{l}", DC), (f"K4_{l}", SD))]
    + [("WH", SC), ("rw", 1), ("rb", 1)]
    + [p for l in range(L) for p in ((f"bt2_{l}", 1), (f"bc2_{l}", 1))]
    + [("bh", 1)]
)
_W_PIECES = (
    [p for l in range(L) for p in ((f"K1_{l}", SC), (f"K3_{l}", SC), (f"K23_{l}", DC))]
    + [p for l in range(L) for p in ((f"bt1_{l}", 1), (f"b23_{l}", 1))]
)
OFF_N, ROWS_N = _layout(_N_PIECES)     # narrow slab, width SC (=32)
OFF_W, ROWS_W = _layout(_W_PIECES)     # wide slab,   width SD (=256)


# ------------------------ one-time host-side parameter packing --------------------------
def pack_params(params):
    """Expand / pack all model weights into two bf16 slabs.  Called ONCE, outside jit."""
    (rw, rb, wt1, bt1, wt2, bt2, wc1, bc1, wc2, bc2, wh, bh) = [
        np.asarray(p, np.float32) for p in params]
    eyeC, eyeS = np.eye(C, dtype=np.float32), np.eye(S, dtype=np.float32)

    wn = np.zeros((ROWS_N, SC), np.float32)
    ww = np.zeros((ROWS_W, SD), np.float32)

    def putn(name, a):
        wn[OFF_N[name]:OFF_N[name] + a.shape[0], :a.shape[1]] = a

    def putw(name, a):
        ww[OFF_W[name]:OFF_W[name] + a.shape[0], :a.shape[1]] = a

    # RevIN: per-channel time-averaging matrix + affine.  Column index j = s*C + c.
    putn("A", np.kron(np.full((S, S), 1.0 / S, np.float32), eyeC))
    putn("rw", np.tile(rw, S)[None, :])                   # [s*C+c] -> rw[c]
    putn("rb", np.tile(rb, S)[None, :])

    for l in range(L):
        K1 = np.kron(wt1[l], eyeC)                        # (SC, DC) temporal Linear(S->D)
        K2 = np.kron(wt2[l], eyeC)                        # (DC, SC) temporal Linear(D->S)
        K3 = np.kron(eyeS, wc1[l])                        # (SC, SD) channel  Linear(C->D)
        K4 = np.kron(eyeS, wc2[l])                        # (SD, SC) channel  Linear(D->C)
        b1 = np.repeat(bt1[l], C)[None, :]                # (1, DC)  [d*C+c] -> bt1[d]
        b2 = np.repeat(bt2[l], C)[None, :]                # (1, SC)  [s*C+c] -> bt2[s]
        b3 = np.tile(bc1[l], S)[None, :]                  # (1, SD)  [s*D+d] -> bc1[d]
        b4 = np.tile(bc2[l], S)[None, :]                  # (1, SC)  [s*C+c] -> bc2[c]
        putw(f"K1_{l}", K1)
        putw(f"K3_{l}", K3)
        putw(f"K23_{l}", K2 @ K3)                         # fused residual back-projection
        putw(f"bt1_{l}", b1)
        putw(f"b23_{l}", b2 @ K3 + b3)
        putn(f"K2_{l}", K2)
        putn(f"K4_{l}", K4)
        putn(f"bt2_{l}", b2)
        putn(f"bc2_{l}", b4)

    # head Linear(C*S -> C*P): rows re-indexed from c*S+s to s*C+c, cols zero-padded K->KP
    putn("WH", np.transpose(wh.reshape(C, S, K), (1, 0, 2)).reshape(SC, K))
    putn("bh", bh[None, :])

    return jnp.asarray(wn, W_DTYPE), jnp.asarray(ww, W_DTYPE)


# ---------------------------------- Pallas kernel ---------------------------------------
def _kernel(x_ref, wn_ref, ww_ref, out_ref):
    on, ow = OFF_N, OFF_W
    f32 = jnp.float32

    h = x_ref[...]                                               # (B, SC), f32
    hb = h.astype(W_DTYPE)

    # ---- RevIN 'norm': two independent stat matmuls, var = E[x^2] - mean^2 --------------
    A = wn_ref[on["A"]:on["A"] + SC, :]
    mean = jnp.dot(hb, A, preferred_element_type=f32)            # broadcast per-(b,c) mean
    m2 = jnp.dot((h * h).astype(W_DTYPE), A, preferred_element_type=f32)
    var = jnp.maximum(m2 - mean * mean, 0.0)
    rw = wn_ref[on["rw"]:on["rw"] + 1, :].astype(f32)
    rb = wn_ref[on["rb"]:on["rb"] + 1, :].astype(f32)
    h = (h - mean) * jax.lax.rsqrt(var + EPS_REVIN) * rw + rb

    # ---- backbone: L ResBlocks (statically unrolled) ------------------------------------
    for l in range(L):
        hb = h.astype(W_DTYPE)
        K1 = ww_ref[ow[f"K1_{l}"]:ow[f"K1_{l}"] + SC, 0:DC]
        K3 = ww_ref[ow[f"K3_{l}"]:ow[f"K3_{l}"] + SC, :]
        b1 = ww_ref[ow[f"bt1_{l}"]:ow[f"bt1_{l}"] + 1, 0:DC].astype(f32)
        # h@K3 is independent of the temporal branch -> overlaps h@K1 on the MXU.
        hK3 = jnp.dot(hb, K3, preferred_element_type=f32)                      # (B, SD)
        t = _gelu(jnp.dot(hb, K1, preferred_element_type=f32) + b1)            # (B, DC)
        tb = t.astype(W_DTYPE)

        K2 = wn_ref[on[f"K2_{l}"]:on[f"K2_{l}"] + DC, :]
        K23 = ww_ref[ow[f"K23_{l}"]:ow[f"K23_{l}"] + DC, :]
        b2 = wn_ref[on[f"bt2_{l}"]:on[f"bt2_{l}"] + 1, :].astype(f32)
        b23 = ww_ref[ow[f"b23_{l}"]:ow[f"b23_{l}"] + 1, :].astype(f32)
        u = jnp.dot(tb, K2, preferred_element_type=f32)          # residual back-projection
        # fused: gelu((h + t@K2 + b2) @ K3 + b3) == gelu(h@K3 + t@K23 + b23)
        c = _gelu(hK3 + jnp.dot(tb, K23, preferred_element_type=f32) + b23)    # (B, SD)

        K4 = wn_ref[on[f"K4_{l}"]:on[f"K4_{l}"] + SD, :]
        b4 = wn_ref[on[f"bc2_{l}"]:on[f"bc2_{l}"] + 1, :].astype(f32)
        h = h + u + b2 + jnp.dot(c.astype(W_DTYPE), K4, preferred_element_type=f32) + b4

    # ---- head: single (B, SC) @ (SC, KP) matmul, full-32-lane store ---------------------
    WH = wn_ref[on["WH"]:on["WH"] + SC, :]
    bh = wn_ref[on["bh"]:on["bh"] + 1, :].astype(f32)
    out_ref[...] = (jnp.dot(h.astype(W_DTYPE), WH, preferred_element_type=f32)
                    + bh).astype(out_ref.dtype)


# ------------------------------------ wrapper -------------------------------------------
@jax.jit
def tsmixer_forward(x, wn, ww):
    """x: (B, C, S) f32 (PyTorch Model layout); wn/ww: bf16 slabs from pack_params."""
    x2 = jnp.transpose(x, (0, 2, 1)).reshape(B, SC)              # [b, s*C+c] = x[b, c, s]
    out = pl.pallas_call(
        _kernel,
        out_shape=jax.ShapeDtypeStruct((B, KP), jnp.float32),
        grid=(1,),                                               # whole batch in one step
        in_specs=[
            pl.BlockSpec((B, SC), lambda i: (0, 0)),             # x slab
            pl.BlockSpec((ROWS_N, SC), lambda i: (0, 0)),        # narrow (width-32) slab
            pl.BlockSpec((ROWS_W, SD), lambda i: (0, 0)),        # wide (width-256) slab
        ],
        out_specs=pl.BlockSpec((B, KP), lambda i: (0, 0)),       # full-lane (B, 32) store
        compiler_params=pltpu.CompilerParams(
            dimension_semantics=("arbitrary",)),
    )(x2, wn, ww)
    return out[:, :K].reshape(B, C, P)


# --------------------------- pure-JAX reference (for checking) --------------------------
def reference_forward(x, params):
    (rw, rb, wt1, bt1, wt2, bt2, wc1, bc1, wc2, bc2, wh, bh) = params

    # RevIN norm (x: (B, C, S), stats over time axis)
    mean = x.mean(-1, keepdims=True)
    var = ((x - mean) ** 2).mean(-1, keepdims=True)
    xn = (x - mean) / jnp.sqrt(var + EPS_REVIN)
    xn = xn * rw[None, :, None] + rb[None, :, None]

    h = jnp.transpose(xn, (0, 2, 1))                             # (B, S, C)
    for l in range(L):
        t = jnp.transpose(h, (0, 2, 1))                          # (B, C, S)
        t = _gelu(t @ wt1[l] + bt1[l]) @ wt2[l] + bt2[l]         # (B, C, S)
        h = h + jnp.transpose(t, (0, 2, 1))
        c = _gelu(h @ wc1[l] + bc1[l]) @ wc2[l] + bc2[l]         # (B, S, C)
        h = h + c
    xc = jnp.transpose(h, (0, 2, 1)).reshape(B, C * S)           # channel-major flatten
    out = xc @ wh + bh
    return out.reshape(B, C, P)


# -------------------------------------- main --------------------------------------------
if __name__ == "__main__":
    key = jax.random.PRNGKey(0)
    keys = jax.random.split(key, 14)
    x = jax.random.normal(keys[0], (B, C, S), jnp.float32)

    def w(k, shape, scale=0.2):
        return scale * jax.random.normal(k, shape, jnp.float32)

    rw = 1.0 + 0.1 * jax.random.normal(keys[1], (C,), jnp.float32)   # RevIN affine weight
    rb = 0.05 * jax.random.normal(keys[2], (C,), jnp.float32)        # RevIN affine bias
    wt1 = w(keys[3], (L, S, D)); bt1 = w(keys[4], (L, D), 0.05)      # temporal Linear(S->D)
    wt2 = w(keys[5], (L, D, S)); bt2 = w(keys[6], (L, S), 0.05)      # temporal Linear(D->S)
    wc1 = w(keys[7], (L, C, D)); bc1 = w(keys[8], (L, D), 0.05)      # channel Linear(C->D)
    wc2 = w(keys[9], (L, D, C)); bc2 = w(keys[10], (L, C), 0.05)     # channel Linear(D->C)
    wh = w(keys[11], (C * S, K)); bh = w(keys[12], (K,), 0.05)       # head Linear(C*S->C*P)
    params = (rw, rb, wt1, bt1, wt2, bt2, wc1, bc1, wc2, bc2, wh, bh)

    wn, ww = pack_params(params)      # one-time host-side packing, outside the jitted path

    out = jax.block_until_ready(tsmixer_forward(x, wn, ww))
    ref = reference_forward(x, params)

    # Tolerance sized for bf16 MXU inputs (~2^-9 relative per operand) compounded through
    # ~9 chained matmuls on O(1) activations; structural errors (wrong offset / kron /
    # bias / fusion algebra) would show up as O(0.1+) differences.
    np.testing.assert_allclose(np.asarray(out), np.asarray(ref), rtol=2e-2, atol=2e-2)
    print("KERNEL_OK")
</pallas_src>

<mosaic_0001>
module attributes {stable_mosaic.version = 11 : i64} {
  func.func @_kernel(%arg0: i32, %arg1: memref<2x32xf32, #tpu.memory_space<vmem>>, %arg2: memref<944x32xbf16, #tpu.memory_space<vmem>>, %arg3: memref<448x256xbf16, #tpu.memory_space<vmem>>, %arg4: memref<2x32xf32, #tpu.memory_space<vmem>>) attributes {dimension_semantics = [#tpu.dimension_semantics<arbitrary>], iteration_bounds = array<i64: 1>, scalar_prefetch = 0 : i64, scratch_operands = 0 : i64, tpu.core_type = #tpu.core_type<tc>, window_params = [{pipeline_mode = #tpu.pipeline_mode<synchronous>, transform_indices = @transform_0, window_bounds = array<i64: 2, 32>}, {pipeline_mode = #tpu.pipeline_mode<synchronous>, transform_indices = @transform_1, window_bounds = array<i64: 944, 32>}, {pipeline_mode = #tpu.pipeline_mode<synchronous>, transform_indices = @transform_2, window_bounds = array<i64: 448, 256>}, {pipeline_mode = #tpu.pipeline_mode<synchronous>, transform_indices = @transform_3, window_bounds = array<i64: 2, 32>}]} {
    %c0 = arith.constant 0 : index
    %c0_0 = arith.constant 0 : index
    %0 = vector.load %arg1[%c0, %c0_0] : memref<2x32xf32, #tpu.memory_space<vmem>>, vector<2x32xf32>
    %1 = arith.truncf %0 : vector<2x32xf32> to vector<2x32xbf16>
    %c0_1 = arith.constant 0 : index
    %c0_2 = arith.constant 0 : index
    %2 = vector.load %arg2[%c0_1, %c0_2] : memref<944x32xbf16, #tpu.memory_space<vmem>>, vector<32x32xbf16>
    %cst = arith.constant dense<0.000000e+00> : vector<2x32xf32>
    %3 = tpu.matmul %1, %2, %cst {dimension_numbers = #tpu.dot_dimension_numbers<[1], [0], [0], [1], [0, 0, 1, 1], [], []>} : vector<2x32xbf16>, vector<32x32xbf16>, vector<2x32xf32> -> vector<2x32xf32>
    %4 = arith.mulf %0, %0 : vector<2x32xf32>
    %5 = arith.truncf %4 : vector<2x32xf32> to vector<2x32xbf16>
    %cst_3 = arith.constant dense<0.000000e+00> : vector<2x32xf32>
    %6 = tpu.matmul %5, %2, %cst_3 {dimension_numbers = #tpu.dot_dimension_numbers<[1], [0], [0], [1], [0, 0, 1, 1], [], []>} : vector<2x32xbf16>, vector<32x32xbf16>, vector<2x32xf32> -> vector<2x32xf32>
    %7 = arith.mulf %3, %3 : vector<2x32xf32>
    %8 = arith.subf %6, %7 : vector<2x32xf32>
    %cst_4 = arith.constant 0.000000e+00 : f32
    %9 = vector.broadcast %cst_4 : f32 to vector<2x32xf32>
    %10 = arith.maximumf %8, %9 : vector<2x32xf32>
    %c832 = arith.constant 832 : index
    %c0_5 = arith.constant 0 : index
    %11 = vector.load %arg2[%c832, %c0_5] : memref<944x32xbf16, #tpu.memory_space<vmem>>, vector<1x32xbf16>
    %12 = arith.extf %11 : vector<1x32xbf16> to vector<1x32xf32>
    %c848 = arith.constant 848 : index
    %c0_6 = arith.constant 0 : index
    %13 = vector.load %arg2[%c848, %c0_6] : memref<944x32xbf16, #tpu.memory_space<vmem>>, vector<1x32xbf16>
    %14 = arith.extf %13 : vector<1x32xbf16> to vector<1x32xf32>
    %15 = arith.subf %0, %3 : vector<2x32xf32>
    %cst_7 = arith.constant 9.99999974E-6 : f32
    %16 = vector.broadcast %cst_7 : f32 to vector<2x32xf32>
    %17 = arith.addf %10, %16 : vector<2x32xf32>
    %18 = math.rsqrt %17 : vector<2x32xf32>
    %19 = arith.mulf %15, %18 : vector<2x32xf32>
    %20 = vector.broadcast %12 : vector<1x32xf32> to vector<2x32xf32>
    %21 = arith.mulf %19, %20 : vector<2x32xf32>
    %22 = vector.broadcast %14 : vector<1x32xf32> to vector<2x32xf32>
    %23 = arith.addf %21, %22 : vector<2x32xf32>
    %24 = arith.truncf %23 : vector<2x32xf32> to vector<2x32xbf16>
    %c0_8 = arith.constant 0 : index
    %c0_9 = arith.constant 0 : index
    %25 = vector.load %arg3[%c0_8, %c0_9] : memref<448x256xbf16, #tpu.memory_space<vmem>>, vector<32x128xbf16>
    %c32 = arith.constant 32 : index
    %c0_10 = arith.constant 0 : index
    %26 = vector.load %arg3[%c32, %c0_10] : memref<448x256xbf16, #tpu.memory_space<vmem>>, vector<32x256xbf16>
    %c384 = arith.constant 384 : index
    %c0_11 = arith.constant 0 : index
    %27 = vector.load %arg3[%c384, %c0_11] : memref<448x256xbf16, #tpu.memory_space<vmem>>, vector<1x128xbf16>
    %28 = arith.extf %27 : vector<1x128xbf16> to vector<1x128xf32>
    %cst_12 = arith.constant dense<0.000000e+00> : vector<2x256xf32>
    %29 = tpu.matmul %24, %26, %cst_12 {dimension_numbers = #tpu.dot_dimension_numbers<[1], [0], [0], [1], [0, 0, 1, 1], [], []>} : vector<2x32xbf16>, vector<32x256xbf16>, vector<2x256xf32> -> vector<2x256xf32>
    %cst_13 = arith.constant dense<0.000000e+00> : vector<2x128xf32>
    %30 = tpu.matmul %24, %25, %cst_13 {dimension_numbers = #tpu.dot_dimension_numbers<[1], [0], [0], [1], [0, 0, 1, 1], [], []>} : vector<2x32xbf16>, vector<32x128xbf16>, vector<2x128xf32> -> vector<2x128xf32>
    %31 = vector.broadcast %28 : vector<1x128xf32> to vector<2x128xf32>
    %32 = arith.addf %30, %31 : vector<2x128xf32>
    %cst_14 = arith.constant 5.000000e-01 : f32
    %33 = vector.broadcast %cst_14 : f32 to vector<2x128xf32>
    %34 = arith.mulf %33, %32 : vector<2x128xf32>
    %cst_15 = arith.constant 4.471500e-02 : f32
    %35 = vector.broadcast %cst_15 : f32 to vector<2x128xf32>
    %36 = arith.mulf %35, %32 : vector<2x128xf32>
    %37 = arith.mulf %36, %32 : vector<2x128xf32>
    %38 = arith.mulf %37, %32 : vector<2x128xf32>
    %39 = arith.addf %32, %38 : vector<2x128xf32>
    %cst_16 = arith.constant 0.797884583 : f32
    %40 = vector.broadcast %cst_16 : f32 to vector<2x128xf32>
    %41 = arith.mulf %40, %39 : vector<2x128xf32>
    %42 = math.tanh %41 : vector<2x128xf32>
    %cst_17 = arith.constant 1.000000e+00 : f32
    %43 = vector.broadcast %cst_17 : f32 to vector<2x128xf32>
    %44 = arith.addf %43, %42 : vector<2x128xf32>
    %45 = arith.mulf %34, %44 : vector<2x128xf32>
    %46 = arith.truncf %45 : vector<2x128xf32> to vector<2x128xbf16>
    %c32_18 = arith.constant 32 : index
    %c0_19 = arith.constant 0 : index
    %47 = vector.load %arg2[%c32_18, %c0_19] : memref<944x32xbf16, #tpu.memory_space<vmem>>, vector<128x32xbf16>
    %c64 = arith.constant 64 : index
    %c0_20 = arith.constant 0 : index
    %48 = vector.load %arg3[%c64, %c0_20] : memref<448x256xbf16, #tpu.memory_space<vmem>>, vector<128x256xbf16>
    %c864 = arith.constant 864 : index
    %c0_21 = arith.constant 0 : index
    %49 = vector.load %arg2[%c864, %c0_21] : memref<944x32xbf16, #tpu.memory_space<vmem>>, vector<1x32xbf16>
    %50 = arith.extf %49 : vector<1x32xbf16> to vector<1x32xf32>
    %c400 = arith.constant 400 : index
    %c0_22 = arith.constant 0 : index
    %51 = vector.load %arg3[%c400, %c0_22] : memref<448x256xbf16, #tpu.memory_space<vmem>>, vector<1x256xbf16>
    %52 = arith.extf %51 : vector<1x256xbf16> to vector<1x256xf32>
    %cst_23 = arith.constant dense<0.000000e+00> : vector<2x32xf32>
    %53 = tpu.matmul %46, %47, %cst_23 {dimension_numbers = #tpu.dot_dimension_numbers<[1], [0], [0], [1], [0, 0, 1, 1], [], []>} : vector<2x128xbf16>, vector<128x32xbf16>, vector<2x32xf32> -> vector<2x32xf32>
    %cst_24 = arith.constant dense<0.000000e+00> : vector<2x256xf32>
    %54 = tpu.matmul %46, %48, %cst_24 {dimension_numbers = #tpu.dot_dimension_numbers<[1], [0], [0], [1], [0, 0, 1, 1], [], []>} : vector<2x128xbf16>, vector<128x256xbf16>, vector<2x256xf32> -> vector<2x256xf32>
    %55 = arith.addf %29, %54 : vector<2x256xf32>
    %56 = vector.broadcast %52 : vector<1x256xf32> to vector<2x256xf32>
    %57 = arith.addf %55, %56 : vector<2x256xf32>
    %cst_25 = arith.constant 5.000000e-01 : f32
    %58 = vector.broadcast %cst_25 : f32 to vector<2x256xf32>
    %59 = arith.mulf %58, %57 : vector<2x256xf32>
    %cst_26 = arith.constant 4.471500e-02 : f32
    %60 = vector.broadcast %cst_26 : f32 to vector<2x256xf32>
    %61 = arith.mulf %60, %57 : vector<2x256xf32>
    %62 = arith.mulf %61, %57 : vector<2x256xf32>
    %63 = arith.mulf %62, %57 : vector<2x256xf32>
    %64 = arith.addf %57, %63 : vector<2x256xf32>
    %cst_27 = arith.constant 0.797884583 : f32
    %65 = vector.broadcast %cst_27 : f32 to vector<2x256xf32>
    %66 = arith.mulf %65, %64 : vector<2x256xf32>
    %67 = math.tanh %66 : vector<2x256xf32>
    %cst_28 = arith.constant 1.000000e+00 : f32
    %68 = vector.broadcast %cst_28 : f32 to vector<2x256xf32>
    %69 = arith.addf %68, %67 : vector<2x256xf32>
    %70 = arith.mulf %59, %69 : vector<2x256xf32>
    %c160 = arith.constant 160 : index
    %c0_29 = arith.constant 0 : index
    %71 = vector.load %arg2[%c160, %c0_29] : memref<944x32xbf16, #tpu.memory_space<vmem>>, vector<256x32xbf16>
    %c880 = arith.constant 880 : index
    %c0_30 = arith.constant 0 : index
    %72 = vector.load %arg2[%c880, %c0_30] : memref<944x32xbf16, #tpu.memory_space<vmem>>, vector<1x32xbf16>
    %73 = arith.extf %72 : vector<1x32xbf16> to vector<1x32xf32>
    %74 = arith.addf %23, %53 : vector<2x32xf32>
    %75 = vector.broadcast %50 : vector<1x32xf32> to vector<2x32xf32>
    %76 = arith.addf %74, %75 : vector<2x32xf32>
    %77 = arith.truncf %70 : vector<2x256xf32> to vector<2x256xbf16>
    %cst_31 = arith.constant dense<0.000000e+00> : vector<2x32xf32>
    %78 = tpu.matmul %77, %71, %cst_31 {dimension_numbers = #tpu.dot_dimension_numbers<[1], [0], [0], [1], [0, 0, 1, 1], [], []>} : vector<2x256xbf16>, vector<256x32xbf16>, vector<2x32xf32> -> vector<2x32xf32>
    %79 = arith.addf %76, %78 : vector<2x32xf32>
    %80 = vector.broadcast %73 : vector<1x32xf32> to vector<2x32xf32>
    %81 = arith.addf %79, %80 : vector<2x32xf32>
    %82 = arith.truncf %81 : vector<2x32xf32> to vector<2x32xbf16>
    %c192 = arith.constant 192 : index
    %c0_32 = arith.constant 0 : index
    %83 = vector.load %arg3[%c192, %c0_32] : memref<448x256xbf16, #tpu.memory_space<vmem>>, vector<32x128xbf16>
    %c224 = arith.constant 224 : index
    %c0_33 = arith.constant 0 : index
    %84 = vector.load %arg3[%c224, %c0_33] : memref<448x256xbf16, #tpu.memory_space<vmem>>, vector<32x256xbf16>
    %c416 = arith.constant 416 : index
    %c0_34 = arith.constant 0 : index
    %85 = vector.load %arg3[%c416, %c0_34] : memref<448x256xbf16, #tpu.memory_space<vmem>>, vector<1x128xbf16>
    %86 = arith.extf %85 : vector<1x128xbf16> to vector<1x128xf32>
    %cst_35 = arith.constant dense<0.000000e+00> : vector<2x256xf32>
    %87 = tpu.matmul %82, %84, %cst_35 {dimension_numbers = #tpu.dot_dimension_numbers<[1], [0], [0], [1], [0, 0, 1, 1], [], []>} : vector<2x32xbf16>, vector<32x256xbf16>, vector<2x256xf32> -> vector<2x256xf32>
    %cst_36 = arith.constant dense<0.000000e+00> : vector<2x128xf32>
    %88 = tpu.matmul %82, %83, %cst_36 {dimension_numbers = #tpu.dot_dimension_numbers<[1], [0], [0], [1], [0, 0, 1, 1], [], []>} : vector<2x32xbf16>, vector<32x128xbf16>, vector<2x128xf32> -> vector<2x128xf32>
    %89 = vector.broadcast %86 : vector<1x128xf32> to vector<2x128xf32>
    %90 = arith.addf %88, %89 : vector<2x128xf32>
    %cst_37 = arith.constant 5.000000e-01 : f32
    %91 = vector.broadcast %cst_37 : f32 to vector<2x128xf32>
    %92 = arith.mulf %91, %90 : vector<2x128xf32>
    %cst_38 = arith.constant 4.471500e-02 : f32
    %93 = vector.broadcast %cst_38 : f32 to vector<2x128xf32>
    %94 = arith.mulf %93, %90 : vector<2x128xf32>
    %95 = arith.mulf %94, %90 : vector<2x128xf32>
    %96 = arith.mulf %95, %90 : vector<2x128xf32>
    %97 = arith.addf %90, %96 : vector<2x128xf32>
    %cst_39 = arith.constant 0.797884583 : f32
    %98 = vector.broadcast %cst_39 : f32 to vector<2x128xf32>
    %99 = arith.mulf %98, %97 : vector<2x128xf32>
    %100 = math.tanh %99 : vector<2x128xf32>
    %cst_40 = arith.constant 1.000000e+00 : f32
    %101 = vector.broadcast %cst_40 : f32 to vector<2x128xf32>
    %102 = arith.addf %101, %100 : vector<2x128xf32>
    %103 = arith.mulf %92, %102 : vector<2x128xf32>
    %104 = arith.truncf %103 : vector<2x128xf32> to vector<2x128xbf16>
    %c416_41 = arith.constant 416 : index
    %c0_42 = arith.constant 0 : index
    %105 = vector.load %arg2[%c416_41, %c0_42] : memref<944x32xbf16, #tpu.memory_space<vmem>>, vector<128x32xbf16>
    %c256 = arith.constant 256 : index
    %c0_43 = arith.constant 0 : index
    %106 = vector.load %arg3[%c256, %c0_43] : memref<448x256xbf16, #tpu.memory_space<vmem>>, vector<128x256xbf16>
    %c896 = arith.constant 896 : index
    %c0_44 = arith.constant 0 : index
    %107 = vector.load %arg2[%c896, %c0_44] : memref<944x32xbf16, #tpu.memory_space<vmem>>, vector<1x32xbf16>
    %108 = arith.extf %107 : vector<1x32xbf16> to vector<1x32xf32>
    %c432 = arith.constant 432 : index
    %c0_45 = arith.constant 0 : index
    %109 = vector.load %arg3[%c432, %c0_45] : memref<448x256xbf16, #tpu.memory_space<vmem>>, vector<1x256xbf16>
    %110 = arith.extf %109 : vector<1x256xbf16> to vector<1x256xf32>
    %cst_46 = arith.constant dense<0.000000e+00> : vector<2x32xf32>
    %111 = tpu.matmul %104, %105, %cst_46 {dimension_numbers = #tpu.dot_dimension_numbers<[1], [0], [0], [1], [0, 0, 1, 1], [], []>} : vector<2x128xbf16>, vector<128x32xbf16>, vector<2x32xf32> -> vector<2x32xf32>
    %cst_47 = arith.constant dense<0.000000e+00> : vector<2x256xf32>
    %112 = tpu.matmul %104, %106, %cst_47 {dimension_numbers = #tpu.dot_dimension_numbers<[1], [0], [0], [1], [0, 0, 1, 1], [], []>} : vector<2x128xbf16>, vector<128x256xbf16>, vector<2x256xf32> -> vector<2x256xf32>
    %113 = arith.addf %87, %112 : vector<2x256xf32>
    %114 = vector.broadcast %110 : vector<1x256xf32> to vector<2x256xf32>
    %115 = arith.addf %113, %114 : vector<2x256xf32>
    %cst_48 = arith.constant 5.000000e-01 : f32
    %116 = vector.broadcast %cst_48 : f32 to vector<2x256xf32>
    %117 = arith.mulf %116, %115 : vector<2x256xf32>
    %cst_49 = arith.constant 4.471500e-02 : f32
    %118 = vector.broadcast %cst_49 : f32 to vector<2x256xf32>
    %119 = arith.mulf %118, %115 : vector<2x256xf32>
    %120 = arith.mulf %119, %115 : vector<2x256xf32>
    %121 = arith.mulf %120, %115 : vector<2x256xf32>
    %122 = arith.addf %115, %121 : vector<2x256xf32>
    %cst_50 = arith.constant 0.797884583 : f32
    %123 = vector.broadcast %cst_50 : f32 to vector<2x256xf32>
    %124 = arith.mulf %123, %122 : vector<2x256xf32>
    %125 = math.tanh %124 : vector<2x256xf32>
    %cst_51 = arith.constant 1.000000e+00 : f32
    %126 = vector.broadcast %cst_51 : f32 to vector<2x256xf32>
    %127 = arith.addf %126, %125 : vector<2x256xf32>
    %128 = arith.mulf %117, %127 : vector<2x256xf32>
    %c544 = arith.constant 544 : index
    %c0_52 = arith.constant 0 : index
    %129 = vector.load %arg2[%c544, %c0_52] : memref<944x32xbf16, #tpu.memory_space<vmem>>, vector<256x32xbf16>
    %c912 = arith.constant 912 : index
    %c0_53 = arith.constant 0 : index
    %130 = vector.load %arg2[%c912, %c0_53] : memref<944x32xbf16, #tpu.memory_space<vmem>>, vector<1x32xbf16>
    %131 = arith.extf %130 : vector<1x32xbf16> to vector<1x32xf32>
    %132 = arith.addf %81, %111 : vector<2x32xf32>
    %133 = vector.broadcast %108 : vector<1x32xf32> to vector<2x32xf32>
    %134 = arith.addf %132, %133 : vector<2x32xf32>
    %135 = arith.truncf %128 : vector<2x256xf32> to vector<2x256xbf16>
    %cst_54 = arith.constant dense<0.000000e+00> : vector<2x32xf32>
    %136 = tpu.matmul %135, %129, %cst_54 {dimension_numbers = #tpu.dot_dimension_numbers<[1], [0], [0], [1], [0, 0, 1, 1], [], []>} : vector<2x256xbf16>, vector<256x32xbf16>, vector<2x32xf32> -> vector<2x32xf32>
    %137 = arith.addf %134, %136 : vector<2x32xf32>
    %138 = vector.broadcast %131 : vector<1x32xf32> to vector<2x32xf32>
    %139 = arith.addf %137, %138 : vector<2x32xf32>
    %c800 = arith.constant 800 : index
    %c0_55 = arith.constant 0 : index
    %140 = vector.load %arg2[%c800, %c0_55] : memref<944x32xbf16, #tpu.memory_space<vmem>>, vector<32x32xbf16>
    %c928 = arith.constant 928 : index
    %c0_56 = arith.constant 0 : index
    %141 = vector.load %arg2[%c928, %c0_56] : memref<944x32xbf16, #tpu.memory_space<vmem>>, vector<1x32xbf16>
    %142 = arith.extf %141 : vector<1x32xbf16> to vector<1x32xf32>
    %143 = arith.truncf %139 : vector<2x32xf32> to vector<2x32xbf16>
    %cst_57 = arith.constant dense<0.000000e+00> : vector<2x32xf32>
    %144 = tpu.matmul %143, %140, %cst_57 {dimension_numbers = #tpu.dot_dimension_numbers<[1], [0], [0], [1], [0, 0, 1, 1], [], []>} : vector<2x32xbf16>, vector<32x32xbf16>, vector<2x32xf32> -> vector<2x32xf32>
    %145 = vector.broadcast %142 : vector<1x32xf32> to vector<2x32xf32>
    %146 = arith.addf %144, %145 : vector<2x32xf32>
    %c0_58 = arith.constant 0 : index
    %c0_59 = arith.constant 0 : index
    %147 = vector.load %arg4[%c0_58, %c0_59] : memref<2x32xf32, #tpu.memory_space<vmem>>, vector<2x32xf32>
    tpu.vector_store %arg4[%c0_58, %c0_59], %146 {strides = array<i32>} : memref<2x32xf32, #tpu.memory_space<vmem>>, vector<2x32xf32>,
    return
  }
  func.func @transform_0(%arg0: i32) -> (i32, i32) {
    %c0_i32 = arith.constant 0 : i32
    %c0_i32_0 = arith.constant 0 : i32
    %c0_i32_1 = arith.constant 0 : i32
    return %c0_i32, %c0_i32_0 : i32, i32
  }
  func.func @transform_1(%arg0: i32) -> (i32, i32) {
    %c0_i32 = arith.constant 0 : i32
    %c0_i32_0 = arith.constant 0 : i32
    %c0_i32_1 = arith.constant 0 : i32
    return %c0_i32, %c0_i32_0 : i32, i32
  }
  func.func @transform_2(%arg0: i32) -> (i32, i32) {
    %c0_i32 = arith.constant 0 : i32
    %c0_i32_0 = arith.constant 0 : i32
    %c0_i32_1 = arith.constant 0 : i32
    return %c0_i32, %c0_i32_0 : i32, i32
  }
  func.func @transform_3(%arg0: i32) -> (i32, i32) {
    %c0_i32 = arith.constant 0 : i32
    %c0_i32_0 = arith.constant 0 : i32
    %c0_i32_1 = arith.constant 0 : i32
    return %c0_i32, %c0_i32_0 : i32, i32
  }
}

</mosaic_0001>

<llo_original>
// kernel: tsmixer_forward.1
$region0: #{tsmixer_forward.1}
  #allocation0 [shape = 'u32[]', space=smem, size = 0x4, offset = 0x4, fixed_abs, tag = 'smem constant byte address 0x4 - core index']
  #allocation1 [shape = 'u32[144,128]{1,0:T(1,128)}', space=vmem, size = 0x12000, scoped, tag = 'internal scratch']
  %s0 = inlined_call_operand.vmem [shape: f32[2,32], index: 0, kind: input, shape index: {}]
  %s1 = inlined_call_operand.vmem [shape: bf16[944,32], index: 1, kind: input, shape index: {}]
  %s2 = inlined_call_operand.vmem [shape: bf16[448,256], index: 2, kind: input, shape index: {}]
  %s3 = inlined_call_operand.vmem [shape: f32[2,32], index: 3, kind: output, shape index: {}]
  %s4 = sld [smem:[#allocation0]]
  $region22: #{tsmixer_forward.1} parent=0
    _
  %s6 = ssub.s32 1, %s4
  %s7 = scalar_select 0, %s6, %s4
  // Predicated region
  $region2: #{tsmixer_forward.1} parent=0 // pred_check
    _
  $region3: #{tsmixer_forward.1} parent=0 // pred_check_branch
    %9 = sbr.rel (0) target = $region5
  $region4: #{tsmixer_forward.1} parent=0 // pred_region
    _
  $region5: #{tsmixer_forward.1} parent=0 // pred_fallthru
    _
  // Predicated region
  $region6: #{tsmixer_forward.1} parent=0 // pred_check
    _
  $region7: #{tsmixer_forward.1} parent=0 // pred_check_branch
    %11 = sbr.rel (0) target = $region9
  $region8: #{tsmixer_forward.1} parent=0 // pred_region
    _
  $region9: #{tsmixer_forward.1} parent=0 // pred_fallthru
    _
  // Predicated region
  $region10: #{tsmixer_forward.1} parent=0 // pred_check
    _
  $region11: #{tsmixer_forward.1} parent=0 // pred_check_branch
    %13 = sbr.rel (0) target = $region13
  $region12: #{tsmixer_forward.1} parent=0 // pred_region
    _
  $region13: #{tsmixer_forward.1} parent=0 // pred_fallthru
    _
  %v15 = vld [vmem:[%s0] sm:$0x3]
  %v16 = vpack.c.bf16 %v15, %v15
  %v17 = vld [vmem:[%s1] sm:$0xf]
  %v18 = vld [vmem:[%s1 + $0x4] sm:$0xf]
  %v19 = vld [vmem:[%s1 + $0x8] sm:$0xf]
  %v20 = vld [vmem:[%s1 + $0xc] sm:$0xf]
  %v25 = vunpack.c.l.b16 %v17
  %v26 = vunpack.c.l.b16 %v18
  %v27 = vunpack.c.l.b16 %v19
  %v28 = vunpack.c.l.b16 %v20
  %v29 = vpack.c.b16 %v26, %v25
  %v30 = vpack.c.b16 %v28, %v27
  %vm33 = vcmask 261120
  %v35 = vsel %vm33, %v16, 0
  %37 = vmatprep.subr.bf16.mxu0 0
  %38 = vmatpush1.bf16.msra.mxu0 %v29
  %39 = vmatprep.subr.bf16.mxu0 0
  %40 = vmatpush1.bf16.msra.mxu0 %v30
  %41 = vmatprep.subr.bf16.mxu0 0
  %42 = vmatpush1.bf16.msra.mxu0 0
  %43 = vmatprep.subr.bf16.mxu0 0
  %44 = vmatpush1.bf16.msra.mxu0 0
  %45 = vmatprep.subr.bf16.mxu0 0
  %46 = vmatpush1.bf16.msra.mxu0 0
  %47 = vmatprep.subr.bf16.mxu0 0
  %48 = vmatpush1.bf16.msra.mxu0 0
  %49 = vmatprep.subr.bf16.mxu0 0
  %50 = vmatpush1.bf16.msra.mxu0 0
  %51 = vmatprep.subr.bf16.mxu0 0
  %52 = vmatpush1.bf16.msra.mxu0 0
  %53 = vmatprep.subr.bf16.mxu0 0
  %54 = vmatpush1.bf16.msra.mxu0 0
  %55 = vmatprep.subr.bf16.mxu0 0
  %56 = vmatpush1.bf16.msra.mxu0 0
  %57 = vmatprep.subr.bf16.mxu0 0
  %58 = vmatpush1.bf16.msra.mxu0 0
  %59 = vmatprep.subr.bf16.mxu0 0
  %60 = vmatpush1.bf16.msra.mxu0 0
  %61 = vmatprep.subr.bf16.mxu0 0
  %62 = vmatpush1.bf16.msra.mxu0 0
  %63 = vmatprep.subr.bf16.mxu0 0
  %64 = vmatpush1.bf16.msra.mxu0 0
  %65 = vmatprep.subr.bf16.mxu0 0
  %66 = vmatpush1.bf16.msra.mxu0 0
  %67 = vmatprep.subr.bf16.mxu0 0
  %68 = vmatpush1.bf16.msra.mxu0 0
  %69 = vmatprep.mubr.bf16.mxu0 0
  %70 = vmatmul.mubr.bf16.gmra.mrb[0].mxu0 %v35
  %v71 = vpop.f32.mrb[0].mxu0
  %v72 = vadd.f32 0.0, %v71
  %v73 = vpop.f32.mrb[0].mxu0
  %v74 = vpop.f32.mrb[0].mxu0
  %v75 = vpop.f32.mrb[0].mxu0
  %76 = vdwg.mxu0
  %v77 = vmul.f32 %v15, %v15
  %v78 = vpack.c.bf16 %v77, %v77
  %v80 = vsel %vm33, %v78, 0
  %82 = vmatprep.subr.bf16.mxu0 0
  %83 = vmatpush1.bf16.msra.mxu0 %v29
  %84 = vmatprep.subr.bf16.mxu0 0
  %85 = vmatpush1.bf16.msra.mxu0 %v30
  %86 = vmatprep.subr.bf16.mxu0 0
  %87 = vmatpush1.bf16.msra.mxu0 0
  %88 = vmatprep.subr.bf16.mxu0 0
  %89 = vmatpush1.bf16.msra.mxu0 0
  %90 = vmatprep.subr.bf16.mxu0 0
  %91 = vmatpush1.bf16.msra.mxu0 0
  %92 = vmatprep.subr.bf16.mxu0 0
  %93 = vmatpush1.bf16.msra.mxu0 0
  %94 = vmatprep.subr.bf16.mxu0 0
  %95 = vmatpush1.bf16.msra.mxu0 0
  %96 = vmatprep.subr.bf16.mxu0 0
  %97 = vmatpush1.bf16.msra.mxu0 0
  %98 = vmatprep.subr.bf16.mxu0 0
  %99 = vmatpush1.bf16.msra.mxu0 0
  %100 = vmatprep.subr.bf16.mxu0 0
  %101 = vmatpush1.bf16.msra.mxu0 0
  %102 = vmatprep.subr.bf16.mxu0 0
  %103 = vmatpush1.bf16.msra.mxu0 0
  %104 = vmatprep.subr.bf16.mxu0 0
  %105 = vmatpush1.bf16.msra.mxu0 0
  %106 = vmatprep.subr.bf16.mxu0 0
  %107 = vmatpush1.bf16.msra.mxu0 0
  %108 = vmatprep.subr.bf16.mxu0 0
  %109 = vmatpush1.bf16.msra.mxu0 0
  %110 = vmatprep.subr.bf16.mxu0 0
  %111 = vmatpush1.bf16.msra.mxu0 0
  %112 = vmatprep.subr.bf16.mxu0 0
  %113 = vmatpush1.bf16.msra.mxu0 0
  %114 = vmatprep.mubr.bf16.mxu0 0
  %115 = vmatmul.mubr.bf16.gmra.mrb[0].mxu0 %v80
  %v116 = vpop.f32.mrb[0].mxu0
  %v117 = vadd.f32 0.0, %v116
  %v118 = vpop.f32.mrb[0].mxu0
  %v119 = vpop.f32.mrb[0].mxu0
  %v120 = vpop.f32.mrb[0].mxu0
  %121 = vdwg.mxu0
  %v122 = vmul.f32 %v72, %v72
  %v123 = vsub.f32 %v117, %v122
  %v124 = vmax.f32 %v123, 0.0
  %v125 = vld [vmem:[%s1 + $0x1a0] sm:$0x1]
  %v126 = vunpack.c.l.bf16 %v125
  %v127 = vld [vmem:[%s1 + $0x1a8] sm:$0x1]
  %v128 = vunpack.c.l.bf16 %v127
  %v129 = vsub.f32 %v15, %v72
  %v130 = vadd.f32 %v124, 1e-05
  %v131 = vrsqrt.pop %v130
  %v132 = vmul.f32 %v129, %v131
  %v133 = vlaneseq
  %v134 = vshrl.u32 %v133, 7
  %v135 = vsub.s32 0, %v134
  %v136 = vrot.slane %v126, %v135
  %v137 = vmul.f32 %v132, %v136
  %v138 = vlaneseq
  %v139 = vshrl.u32 %v138, 7
  %v140 = vsub.s32 0, %v139
  %v141 = vrot.slane %v128, %v140
  %v142 = vadd.f32 %v137, %v141
  %v143 = vpack.c.bf16 %v142, %v142
  %v144 = vld [vmem:[%s2] sm:$0xf]
  %v145 = vld [vmem:[%s2 + $0x8] sm:$0xf]
  %v146 = vld [vmem:[%s2 + $0x10] sm:$0xf]
  %v147 = vld [vmem:[%s2 + $0x18] sm:$0xf]
  %v148 = vld [vmem:[%s2 + $0x20] sm:$0xff]
  %v149 = vld [vmem:[%s2 + $0x28] sm:$0xff]
  %v150 = vld [vmem:[%s2 + $0x30] sm:$0xff]
  %v151 = vld [vmem:[%s2 + $0x38] sm:$0xff]
  %v152 = vld [vmem:[%s2 + $0x180] sm:$0x1]
  %v153 = vunpack.c.l.bf16 %v152
  %v154 = vlaneseq
  %v155 = vshrl.u32 %v154, 7
  %v156 = vsub.s32 0, %v155
  %v157 = vrot.slane %v153, %v156
  %v162 = vunpack.c.l.b16 %v144
  %v163 = vunpack.c.l.b16 %v145
  %v164 = vunpack.c.l.b16 %v146
  %v165 = vunpack.c.l.b16 %v147
  %v166 = vpack.c.b16 %v163, %v162
  %v167 = vpack.c.b16 %v165, %v164
  %v171 = vsel %vm33, %v143, 0
  %173 = vmatprep.subr.bf16.mxu0 0
  %174 = vmatpush1.bf16.msra.mxu0 %v166
  %175 = vmatprep.subr.bf16.mxu0 0
  %176 = vmatpush1.bf16.msra.mxu0 %v167
  %177 = vmatprep.subr.bf16.mxu0 0
  %178 = vmatpush1.bf16.msra.mxu0 0
  %179 = vmatprep.subr.bf16.mxu0 0
  %180 = vmatpush1.bf16.msra.mxu0 0
  %181 = vmatprep.subr.bf16.mxu0 0
  %182 = vmatpush1.bf16.msra.mxu0 0
  %183 = vmatprep.subr.bf16.mxu0 0
  %184 = vmatpush1.bf16.msra.mxu0 0
  %185 = vmatprep.subr.bf16.mxu0 0
  %186 = vmatpush1.bf16.msra.mxu0 0
  %187 = vmatprep.subr.bf16.mxu0 0
  %188 = vmatpush1.bf16.msra.mxu0 0
  %189 = vmatprep.subr.bf16.mxu0 0
  %190 = vmatpush1.bf16.msra.mxu0 0
  %191 = vmatprep.subr.bf16.mxu0 0
  %192 = vmatpush1.bf16.msra.mxu0 0
  %193 = vmatprep.subr.bf16.mxu0 0
  %194 = vmatpush1.bf16.msra.mxu0 0
  %195 = vmatprep.subr.bf16.mxu0 0
  %196 = vmatpush1.bf16.msra.mxu0 0
  %197 = vmatprep.subr.bf16.mxu0 0
  %198 = vmatpush1.bf16.msra.mxu0 0
  %199 = vmatprep.subr.bf16.mxu0 0
  %200 = vmatpush1.bf16.msra.mxu0 0
  %201 = vmatprep.subr.bf16.mxu0 0
  %202 = vmatpush1.bf16.msra.mxu0 0
  %203 = vmatprep.subr.bf16.mxu0 0
  %204 = vmatpush1.bf16.msra.mxu0 0
  %205 = vmatprep.mubr.bf16.mxu0 0
  %206 = vmatmul.mubr.bf16.gmra.mrb[0].mxu0 %v171
  %v207 = vpop.f32.mrb[0].mxu0
  %v208 = vadd.f32 %v157, %v207
  %v209 = vpop.f32.mrb[0].mxu0
  %v210 = vpop.f32.mrb[0].mxu0
  %v211 = vpop.f32.mrb[0].mxu0
  %212 = vdwg.mxu0
  %v213 = vmul.f32 %v208, 0.5
  %v214 = vmul.f32 %v208, 0.044715
  %v215 = vmul.f32 %v214, %v208
  %v216 = vmul.f32 %v215, %v208
  %v217 = vadd.f32 %v208, %v216
  %v218 = vmul.f32 %v217, 0.7978846
  %v219 = vtanh.pop %v218
  %v220 = vadd.f32 %v219, 1.0
  %v221 = vmul.f32 %v213, %v220
  %v222 = vpack.c.bf16 %v221, %v221
  %v223 = vld [vmem:[%s1 + $0x10] sm:$0xf]
  %v224 = vld [vmem:[%s1 + $0x14] sm:$0xf]
  %v225 = vld [vmem:[%s1 + $0x18] sm:$0xf]
  %v226 = vld [vmem:[%s1 + $0x1c] sm:$0xf]
  %v227 = vld [vmem:[%s1 + $0x20] sm:$0xf]
  %v228 = vld [vmem:[%s1 + $0x24] sm:$0xf]
  %v229 = vld [vmem:[%s1 + $0x28] sm:$0xf]
  %v230 = vld [vmem:[%s1 + $0x2c] sm:$0xf]
  %v231 = vld [vmem:[%s1 + $0x30] sm:$0xf]
  %v232 = vld [vmem:[%s1 + $0x34] sm:$0xf]
  %v233 = vld [vmem:[%s1 + $0x38] sm:$0xf]
  %v234 = vld [vmem:[%s1 + $0x3c] sm:$0xf]
  %v235 = vld [vmem:[%s1 + $0x40] sm:$0xf]
  %v236 = vld [vmem:[%s1 + $0x44] sm:$0xf]
  %v237 = vld [vmem:[%s1 + $0x48] sm:$0xf]
  %v238 = vld [vmem:[%s1 + $0x4c] sm:$0xf]
  %v239 = vld [vmem:[%s2 + $0x40] sm:$0xff]
  %v240 = vld [vmem:[%s2 + $0x48] sm:$0xff]
  %v241 = vld [vmem:[%s2 + $0x50] sm:$0xff]
  %v242 = vld [vmem:[%s2 + $0x58] sm:$0xff]
  %v243 = vld [vmem:[%s2 + $0x60] sm:$0xff]
  %v244 = vld [vmem:[%s2 + $0x68] sm:$0xff]
  %v245 = vld [vmem:[%s2 + $0x70] sm:$0xff]
  %v246 = vld [vmem:[%s2 + $0x78] sm:$0xff]
  %v247 = vld [vmem:[%s2 + $0x80] sm:$0xff]
  %v248 = vld [vmem:[%s2 + $0x88] sm:$0xff]
  %v249 = vld [vmem:[%s2 + $0x90] sm:$0xff]
  %v250 = vld [vmem:[%s2 + $0x98] sm:$0xff]
  %v251 = vld [vmem:[%s2 + $0xa0] sm:$0xff]
  %v252 = vld [vmem:[%s2 + $0xa8] sm:$0xff]
  %v253 = vld [vmem:[%s2 + $0xb0] sm:$0xff]
  %v254 = vld [vmem:[%s2 + $0xb8] sm:$0xff]
  %v255 = vld [vmem:[%s1 + $0x1b0] sm:$0x1]
  %v256 = vunpack.c.l.bf16 %v255
  %v257 = vld [vmem:[%s2 + $0x190] sm:$0x11]
  %v258 = vunpack.c.l.bf16 %v257
  %v259 = vunpack.c.h.bf16 %v257
  %v276 = vunpack.c.l.b16 %v223
  %v277 = vunpack.c.l.b16 %v224
  %v278 = vunpack.c.l.b16 %v225
  %v279 = vunpack.c.l.b16 %v226
  %v280 = vunpack.c.l.b16 %v227
  %v281 = vunpack.c.l.b16 %v228
  %v282 = vunpack.c.l.b16 %v229
  %v283 = vunpack.c.l.b16 %v230
  %v284 = vunpack.c.l.b16 %v231
  %v285 = vunpack.c.l.b16 %v232
  %v286 = vunpack.c.l.b16 %v233
  %v287 = vunpack.c.l.b16 %v234
  %v288 = vunpack.c.l.b16 %v235
  %v289 = vunpack.c.l.b16 %v236
  %v290 = vunpack.c.l.b16 %v237
  %v291 = vunpack.c.l.b16 %v238
  %v292 = vpack.c.b16 %v277, %v276
  %v293 = vpack.c.b16 %v279, %v278
  %v294 = vpack.c.b16 %v281, %v280
  %v295 = vpack.c.b16 %v283, %v282
  %v296 = vpack.c.b16 %v285, %v284
  %v297 = vpack.c.b16 %v287, %v286
  %v298 = vpack.c.b16 %v289, %v288
  %v299 = vpack.c.b16 %v291, %v290
  %308 = vmatprep.subr.bf16.mxu0 0
  %309 = vmatpush1.bf16.msra.mxu0 %v292
  %310 = vmatprep.subr.bf16.mxu0 0
  %311 = vmatpush1.bf16.msra.mxu0 %v293
  %312 = vmatprep.subr.bf16.mxu0 0
  %313 = vmatpush1.bf16.msra.mxu0 %v294
  %314 = vmatprep.subr.bf16.mxu0 0
  %315 = vmatpush1.bf16.msra.mxu0 %v295
  %316 = vmatprep.subr.bf16.mxu0 0
  %317 = vmatpush1.bf16.msra.mxu0 %v296
  %318 = vmatprep.subr.bf16.mxu0 0
  %319 = vmatpush1.bf16.msra.mxu0 %v297
  %320 = vmatprep.subr.bf16.mxu0 0
  %321 = vmatpush1.bf16.msra.mxu0 %v298
  %322 = vmatprep.subr.bf16.mxu0 0
  %323 = vmatpush1.bf16.msra.mxu0 %v299
  %324 = vmatprep.subr.bf16.mxu0 0
  %325 = vmatpush1.bf16.msra.mxu0 0
  %326 = vmatprep.subr.bf16.mxu0 0
  %327 = vmatpush1.bf16.msra.mxu0 0
  %328 = vmatprep.subr.bf16.mxu0 0
  %329 = vmatpush1.bf16.msra.mxu0 0
  %330 = vmatprep.subr.bf16.mxu0 0
  %331 = vmatpush1.bf16.msra.mxu0 0
  %332 = vmatprep.subr.bf16.mxu0 0
  %333 = vmatpush1.bf16.msra.mxu0 0
  %334 = vmatprep.subr.bf16.mxu0 0
  %335 = vmatpush1.bf16.msra.mxu0 0
  %336 = vmatprep.subr.bf16.mxu0 0
  %337 = vmatpush1.bf16.msra.mxu0 0
  %338 = vmatprep.subr.bf16.mxu0 0
  %339 = vmatpush1.bf16.msra.mxu0 0
  %340 = vmatprep.mubr.bf16.mxu0 0
  %341 = vmatmul.mubr.bf16.gmra.mrb[0].mxu0 %v222
  %v342 = vpop.f32.mrb[0].mxu0
  %v343 = vadd.f32 0.0, %v342
  %v344 = vpop.f32.mrb[0].mxu0
  %v345 = vpop.f32.mrb[0].mxu0
  %v346 = vpop.f32.mrb[0].mxu0
  %347 = vdwg.mxu0
  %v364 = vunpack.c.l.b16 %v239
  %v365 = vunpack.c.h.b16 %v239
  %v366 = vunpack.c.l.b16 %v240
  %v367 = vunpack.c.h.b16 %v240
  %v368 = vunpack.c.l.b16 %v241
  %v369 = vunpack.c.h.b16 %v241
  %v370 = vunpack.c.l.b16 %v242
  %v371 = vunpack.c.h.b16 %v242
  %v372 = vunpack.c.l.b16 %v243
  %v373 = vunpack.c.h.b16 %v243
  %v374 = vunpack.c.l.b16 %v244
  %v375 = vunpack.c.h.b16 %v244
  %v376 = vunpack.c.l.b16 %v245
  %v377 = vunpack.c.h.b16 %v245
  %v378 = vunpack.c.l.b16 %v246
  %v379 = vunpack.c.h.b16 %v246
  %v380 = vunpack.c.l.b16 %v247
  %v381 = vunpack.c.h.b16 %v247
  %v382 = vunpack.c.l.b16 %v248
  %v383 = vunpack.c.h.b16 %v248
  %v384 = vunpack.c.l.b16 %v249
  %v385 = vunpack.c.h.b16 %v249
  %v386 = vunpack.c.l.b16 %v250
  %v387 = vunpack.c.h.b16 %v250
  %v388 = vunpack.c.l.b16 %v251
  %v389 = vunpack.c.h.b16 %v251
  %v390 = vunpack.c.l.b16 %v252
  %v391 = vunpack.c.h.b16 %v252
  %v392 = vunpack.c.l.b16 %v253
  %v393 = vunpack.c.h.b16 %v253
  %v394 = vunpack.c.l.b16 %v254
  %v395 = vunpack.c.h.b16 %v254
  %v396 = vpack.c.b16 %v366, %v364
  %v397 = vpack.c.b16 %v367, %v365
  %v398 = vpack.c.b16 %v370, %v368
  %v399 = vpack.c.b16 %v371, %v369
  %v400 = vpack.c.b16 %v374, %v372
  %v401 = vpack.c.b16 %v375, %v373
  %v402 = vpack.c.b16 %v378, %v376
  %v403 = vpack.c.b16 %v379, %v377
  %v404 = vpack.c.b16 %v382, %v380
  %v405 = vpack.c.b16 %v383, %v381
  %v406 = vpack.c.b16 %v386, %v384
  %v407 = vpack.c.b16 %v387, %v385
  %v408 = vpack.c.b16 %v390, %v388
  %v409 = vpack.c.b16 %v391, %v389
  %v410 = vpack.c.b16 %v394, %v392
  %v411 = vpack.c.b16 %v395, %v393
  %428 = vmatprep.subr.bf16.mxu0 %v397
  %429 = vmatpush1.bf16.msra.mxu0 %v396
  %430 = vmatprep.subr.bf16.mxu0 %v399
  %431 = vmatpush1.bf16.msra.mxu0 %v398
  %432 = vmatprep.subr.bf16.mxu0 %v401
  %433 = vmatpush1.bf16.msra.mxu0 %v400
  %434 = vmatprep.subr.bf16.mxu0 %v403
  %435 = vmatpush1.bf16.msra.mxu0 %v402
  %436 = vmatprep.subr.bf16.mxu0 %v405
  %437 = vmatpush1.bf16.msra.mxu0 %v404
  %438 = vmatprep.subr.bf16.mxu0 %v407
  %439 = vmatpush1.bf16.msra.mxu0 %v406
  %440 = vmatprep.subr.bf16.mxu0 %v409
  %441 = vmatpush1.bf16.msra.mxu0 %v408
  %442 = vmatprep.subr.bf16.mxu0 %v411
  %443 = vmatpush1.bf16.msra.mxu0 %v410
  %444 = vmatprep.subr.bf16.mxu0 0
  %445 = vmatpush1.bf16.msra.mxu0 0
  %446 = vmatprep.subr.bf16.mxu0 0
  %447 = vmatpush1.bf16.msra.mxu0 0
  %448 = vmatprep.subr.bf16.mxu0 0
  %449 = vmatpush1.bf16.msra.mxu0 0
  %450 = vmatprep.subr.bf16.mxu0 0
  %451 = vmatpush1.bf16.msra.mxu0 0
  %452 = vmatprep.subr.bf16.mxu0 0
  %453 = vmatpush1.bf16.msra.mxu0 0
  %454 = vmatprep.subr.bf16.mxu0 0
  %455 = vmatpush1.bf16.msra.mxu0 0
  %456 = vmatprep.subr.bf16.mxu0 0
  %457 = vmatpush1.bf16.msra.mxu0 0
  %458 = vmatprep.subr.bf16.mxu0 0
  %459 = vmatpush1.bf16.msra.mxu0 0
  %460 = vmatprep.mubr.bf16.mxu0 0
  %461 = vmatmul.mubr.bf16.gmra.mrb[0].mxu0 %v222
  %v462 = vpop.f32.mrb[0].mxu0
  %v463 = vadd.f32 0.0, %v462
  %v464 = vpop.f32.mrb[0].mxu0
  %v465 = vadd.f32 0.0, %v464
  %v466 = vpop.f32.mrb[0].mxu0
  %v467 = vpop.f32.mrb[0].mxu0
  %468 = vdwg.mxu0
  %v473 = vunpack.c.l.b16 %v148
  %v474 = vunpack.c.h.b16 %v148
  %v475 = vunpack.c.l.b16 %v149
  %v476 = vunpack.c.h.b16 %v149
  %v477 = vunpack.c.l.b16 %v150
  %v478 = vunpack.c.h.b16 %v150
  %v479 = vunpack.c.l.b16 %v151
  %v480 = vunpack.c.h.b16 %v151
  %v481 = vpack.c.b16 %v475, %v473
  %v482 = vpack.c.b16 %v476, %v474
  %v483 = vpack.c.b16 %v479, %v477
  %v484 = vpack.c.b16 %v480, %v478
  %489 = vmatprep.subr.bf16.mxu0 %v482
  %490 = vmatpush1.bf16.msra.mxu0 %v481
  %491 = vmatprep.subr.bf16.mxu0 %v484
  %492 = vmatpush1.bf16.msra.mxu0 %v483
  %493 = vmatprep.subr.bf16.mxu0 0
  %494 = vmatpush1.bf16.msra.mxu0 0
  %495 = vmatprep.subr.bf16.mxu0 0
  %496 = vmatpush1.bf16.msra.mxu0 0
  %497 = vmatprep.subr.bf16.mxu0 0
  %498 = vmatpush1.bf16.msra.mxu0 0
  %499 = vmatprep.subr.bf16.mxu0 0
  %500 = vmatpush1.bf16.msra.mxu0 0
  %501 = vmatprep.subr.bf16.mxu0 0
  %502 = vmatpush1.bf16.msra.mxu0 0
  %503 = vmatprep.subr.bf16.mxu0 0
  %504 = vmatpush1.bf16.msra.mxu0 0
  %505 = vmatprep.subr.bf16.mxu0 0
  %506 = vmatpush1.bf16.msra.mxu0 0
  %507 = vmatprep.subr.bf16.mxu0 0
  %508 = vmatpush1.bf16.msra.mxu0 0
  %509 = vmatprep.subr.bf16.mxu0 0
  %510 = vmatpush1.bf16.msra.mxu0 0
  %511 = vmatprep.subr.bf16.mxu0 0
  %512 = vmatpush1.bf16.msra.mxu0 0
  %513 = vmatprep.subr.bf16.mxu0 0
  %514 = vmatpush1.bf16.msra.mxu0 0
  %515 = vmatprep.subr.bf16.mxu0 0
  %516 = vmatpush1.bf16.msra.mxu0 0
  %517 = vmatprep.subr.bf16.mxu0 0
  %518 = vmatpush1.bf16.msra.mxu0 0
  %519 = vmatprep.subr.bf16.mxu0 0
  %520 = vmatpush1.bf16.msra.mxu0 0
  %521 = vmatprep.mubr.bf16.mxu0 0
  %522 = vmatmul.mubr.bf16.gmra.mrb[0].mxu0 %v171
  %v523 = vpop.f32.mrb[0].mxu0
  %v524 = vadd.f32 %v463, %v523
  %v525 = vpop.f32.mrb[0].mxu0
  %v526 = vadd.f32 %v465, %v525
  %v527 = vpop.f32.mrb[0].mxu0
  %v528 = vpop.f32.mrb[0].mxu0
  %529 = vdwg.mxu0
  %v530 = vlaneseq
  %v531 = vshrl.u32 %v530, 7
  %v532 = vsub.s32 0, %v531
  %v533 = vrot.slane %v258, %v532
  %v534 = vlaneseq
  %v535 = vshrl.u32 %v534, 7
  %v536 = vsub.s32 0, %v535
  %v537 = vrot.slane %v259, %v536
  %v538 = vadd.f32 %v524, %v533
  %v539 = vadd.f32 %v526, %v537
  %v540 = vmul.f32 %v538, 0.5
  %v541 = vmul.f32 %v539, 0.5
  %v542 = vmul.f32 %v538, 0.044715
  %v543 = vmul.f32 %v539, 0.044715
  %v544 = vmul.f32 %v542, %v538
  %v545 = vmul.f32 %v543, %v539
  %v546 = vmul.f32 %v544, %v538
  %v547 = vmul.f32 %v545, %v539
  %v548 = vadd.f32 %v538, %v546
  %v549 = vadd.f32 %v539, %v547
  %v550 = vmul.f32 %v548, 0.7978846
  %v551 = vmul.f32 %v549, 0.7978846
  %v552 = vtanh.pop %v550
  %v553 = vtanh.pop %v551
  %v554 = vadd.f32 %v552, 1.0
  %v555 = vadd.f32 %v553, 1.0
  %v556 = vmul.f32 %v540, %v554
  %v557 = vmul.f32 %v541, %v555
  %v558 = vld [vmem:[%s1 + $0x50] sm:$0xf]
  %v559 = vld [vmem:[%s1 + $0x54] sm:$0xf]
  %v560 = vld [vmem:[%s1 + $0x58] sm:$0xf]
  %v561 = vld [vmem:[%s1 + $0x5c] sm:$0xf]
  %v562 = vld [vmem:[%s1 + $0x60] sm:$0xf]
  %v563 = vld [vmem:[%s1 + $0x64] sm:$0xf]
  %v564 = vld [vmem:[%s1 + $0x68] sm:$0xf]
  %v565 = vld [vmem:[%s1 + $0x6c] sm:$0xf]
  %v566 = vld [vmem:[%s1 + $0x70] sm:$0xf]
  %v567 = vld [vmem:[%s1 + $0x74] sm:$0xf]
  %v568 = vld [vmem:[%s1 + $0x78] sm:$0xf]
  %v569 = vld [vmem:[%s1 + $0x7c] sm:$0xf]
  %v570 = vld [vmem:[%s1 + $0x80] sm:$0xf]
  %v571 = vld [vmem:[%s1 + $0x84] sm:$0xf]
  %v572 = vld [vmem:[%s1 + $0x88] sm:$0xf]
  %v573 = vld [vmem:[%s1 + $0x8c] sm:$0xf]
  %v574 = vld [vmem:[%s1 + $0x90] sm:$0xf]
  %v575 = vld [vmem:[%s1 + $0x94] sm:$0xf]
  %v576 = vld [vmem:[%s1 + $0x98] sm:$0xf]
  %v577 = vld [vmem:[%s1 + $0x9c] sm:$0xf]
  %v578 = vld [vmem:[%s1 + $0xa0] sm:$0xf]
  %v579 = vld [vmem:[%s1 + $0xa4] sm:$0xf]
  %v580 = vld [vmem:[%s1 + $0xa8] sm:$0xf]
  %v581 = vld [vmem:[%s1 + $0xac] sm:$0xf]
  %v582 = vld [vmem:[%s1 + $0xb0] sm:$0xf]
  %v583 = vld [vmem:[%s1 + $0xb4] sm:$0xf]
  %v584 = vld [vmem:[%s1 + $0xb8] sm:$0xf]
  %v585 = vld [vmem:[%s1 + $0xbc] sm:$0xf]
  %v586 = vld [vmem:[%s1 + $0xc0] sm:$0xf]
  %v587 = vld [vmem:[%s1 + $0xc4] sm:$0xf]
  %v588 = vld [vmem:[%s1 + $0xc8] sm:$0xf]
  %v589 = vld [vmem:[%s1 + $0xcc] sm:$0xf]
  %v590 = vld [vmem:[%s1 + $0x1b8] sm:$0x1]
  %v591 = vunpack.c.l.bf16 %v590
  %v592 = vadd.f32 %v142, %v343
  %v593 = vlaneseq
  %v594 = vshrl.u32 %v593, 7
  %v595 = vsub.s32 0, %v594
  %v596 = vrot.slane %v256, %v595
  %v597 = vadd.f32 %v592, %v596
  %v598 = vpack.c.bf16 %v556, %v556
  %v599 = vpack.c.bf16 %v557, %v557
  %v632 = vunpack.c.l.b16 %v558
  %v633 = vunpack.c.l.b16 %v559
  %v634 = vunpack.c.l.b16 %v560
  %v635 = vunpack.c.l.b16 %v561
  %v636 = vunpack.c.l.b16 %v562
  %v637 = vunpack.c.l.b16 %v563
  %v638 = vunpack.c.l.b16 %v564
  %v639 = vunpack.c.l.b16 %v565
  %v640 = vunpack.c.l.b16 %v566
  %v641 = vunpack.c.l.b16 %v567
  %v642 = vunpack.c.l.b16 %v568
  %v643 = vunpack.c.l.b16 %v569
  %v644 = vunpack.c.l.b16 %v570
  %v645 = vunpack.c.l.b16 %v571
  %v646 = vunpack.c.l.b16 %v572
  %v647 = vunpack.c.l.b16 %v573
  %v648 = vunpack.c.l.b16 %v574
  %v649 = vunpack.c.l.b16 %v575
  %v650 = vunpack.c.l.b16 %v576
  %v651 = vunpack.c.l.b16 %v577
  %v652 = vunpack.c.l.b16 %v578
  %v653 = vunpack.c.l.b16 %v579
  %v654 = vunpack.c.l.b16 %v580
  %v655 = vunpack.c.l.b16 %v581
  %v656 = vunpack.c.l.b16 %v582
  %v657 = vunpack.c.l.b16 %v583
  %v658 = vunpack.c.l.b16 %v584
  %v659 = vunpack.c.l.b16 %v585
  %v660 = vunpack.c.l.b16 %v586
  %v661 = vunpack.c.l.b16 %v587
  %v662 = vunpack.c.l.b16 %v588
  %v663 = vunpack.c.l.b16 %v589
  %v664 = vpack.c.b16 %v633, %v632
  %v665 = vpack.c.b16 %v635, %v634
  %v666 = vpack.c.b16 %v637, %v636
  %v667 = vpack.c.b16 %v639, %v638
  %v668 = vpack.c.b16 %v641, %v640
  %v669 = vpack.c.b16 %v643, %v642
  %v670 = vpack.c.b16 %v645, %v644
  %v671 = vpack.c.b16 %v647, %v646
  %v672 = vpack.c.b16 %v649, %v648
  %v673 = vpack.c.b16 %v651, %v650
  %v674 = vpack.c.b16 %v653, %v652
  %v675 = vpack.c.b16 %v655, %v654
  %v676 = vpack.c.b16 %v657, %v656
  %v677 = vpack.c.b16 %v659, %v658
  %v678 = vpack.c.b16 %v661, %v660
  %v679 = vpack.c.b16 %v663, %v662
  %696 = vmatprep.subr.bf16.mxu0 0
  %697 = vmatpush1.bf16.msra.mxu0 %v664
  %698 = vmatprep.subr.bf16.mxu0 0
  %699 = vmatpush1.bf16.msra.mxu0 %v665
  %700 = vmatprep.subr.bf16.mxu0 0
  %701 = vmatpush1.bf16.msra.mxu0 %v666
  %702 = vmatprep.subr.bf16.mxu0 0
  %703 = vmatpush1.bf16.msra.mxu0 %v667
  %704 = vmatprep.subr.bf16.mxu0 0
  %705 = vmatpush1.bf16.msra.mxu0 %v668
  %706 = vmatprep.subr.bf16.mxu0 0
  %707 = vmatpush1.bf16.msra.mxu0 %v669
  %708 = vmatprep.subr.bf16.mxu0 0
  %709 = vmatpush1.bf16.msra.mxu0 %v670
  %710 = vmatprep.subr.bf16.mxu0 0
  %711 = vmatpush1.bf16.msra.mxu0 %v671
  %712 = vmatprep.subr.bf16.mxu0 0
  %713 = vmatpush1.bf16.msra.mxu0 %v672
  %714 = vmatprep.subr.bf16.mxu0 0
  %715 = vmatpush1.bf16.msra.mxu0 %v673
  %716 = vmatprep.subr.bf16.mxu0 0
  %717 = vmatpush1.bf16.msra.mxu0 %v674
  %718 = vmatprep.subr.bf16.mxu0 0
  %719 = vmatpush1.bf16.msra.mxu0 %v675
  %720 = vmatprep.subr.bf16.mxu0 0
  %721 = vmatpush1.bf16.msra.mxu0 %v676
  %722 = vmatprep.subr.bf16.mxu0 0
  %723 = vmatpush1.bf16.msra.mxu0 %v677
  %724 = vmatprep.subr.bf16.mxu0 0
  %725 = vmatpush1.bf16.msra.mxu0 %v678
  %726 = vmatprep.subr.bf16.mxu0 0
  %727 = vmatpush1.bf16.msra.mxu0 %v679
  %728 = vmatprep.mubr.bf16.mxu0 %v599
  %729 = vmatmul.mubr.bf16.gmra.mrb[0].mxu0 %v598
  %v730 = vpop.f32.mrb[0].mxu0
  %v731 = vadd.f32 0.0, %v730
  %v732 = vpop.f32.mrb[0].mxu0
  %v733 = vpop.f32.mrb[0].mxu0
  %v734 = vpop.f32.mrb[0].mxu0
  %735 = vdwg.mxu0
  %v736 = vadd.f32 %v597, %v731
  %v737 = vlaneseq
  %v738 = vshrl.u32 %v737, 7
  %v739 = vsub.s32 0, %v738
  %v740 = vrot.slane %v591, %v739
  %v741 = vadd.f32 %v736, %v740
  %v742 = vpack.c.bf16 %v741, %v741
  %v743 = vld [vmem:[%s2 + $0xc0] sm:$0xf]
  %v744 = vld [vmem:[%s2 + $0xc8] sm:$0xf]
  %v745 = vld [vmem:[%s2 + $0xd0] sm:$0xf]
  %v746 = vld [vmem:[%s2 + $0xd8] sm:$0xf]
  %v747 = vld [vmem:[%s2 + $0xe0] sm:$0xff]
  %v748 = vld [vmem:[%s2 + $0xe8] sm:$0xff]
  %v749 = vld [vmem:[%s2 + $0xf0] sm:$0xff]
  %v750 = vld [vmem:[%s2 + $0xf8] sm:$0xff]
  %v751 = vld [vmem:[%s2 + $0x1a0] sm:$0x1]
  %v752 = vunpack.c.l.bf16 %v751
  %v753 = vlaneseq
  %v754 = vshrl.u32 %v753, 7
  %v755 = vsub.s32 0, %v754
  %v756 = vrot.slane %v752, %v755
  %v761 = vunpack.c.l.b16 %v743
  %v762 = vunpack.c.l.b16 %v744
  %v763 = vunpack.c.l.b16 %v745
  %v764 = vunpack.c.l.b16 %v746
  %v765 = vpack.c.b16 %v762, %v761
  %v766 = vpack.c.b16 %v764, %v763
  %v770 = vsel %vm33, %v742, 0
  %772 = vmatprep.subr.bf16.mxu0 0
  %773 = vmatpush1.bf16.msra.mxu0 %v765
  %774 = vmatprep.subr.bf16.mxu0 0
  %775 = vmatpush1.bf16.msra.mxu0 %v766
  %776 = vmatprep.subr.bf16.mxu0 0
  %777 = vmatpush1.bf16.msra.mxu0 0
  %778 = vmatprep.subr.bf16.mxu0 0
  %779 = vmatpush1.bf16.msra.mxu0 0
  %780 = vmatprep.subr.bf16.mxu0 0
  %781 = vmatpush1.bf16.msra.mxu0 0
  %782 = vmatprep.subr.bf16.mxu0 0
  %783 = vmatpush1.bf16.msra.mxu0 0
  %784 = vmatprep.subr.bf16.mxu0 0
  %785 = vmatpush1.bf16.msra.mxu0 0
  %786 = vmatprep.subr.bf16.mxu0 0
  %787 = vmatpush1.bf16.msra.mxu0 0
  %788 = vmatprep.subr.bf16.mxu0 0
  %789 = vmatpush1.bf16.msra.mxu0 0
  %790 = vmatprep.subr.bf16.mxu0 0
  %791 = vmatpush1.bf16.msra.mxu0 0
  %792 = vmatprep.subr.bf16.mxu0 0
  %793 = vmatpush1.bf16.msra.mxu0 0
  %794 = vmatprep.subr.bf16.mxu0 0
  %795 = vmatpush1.bf16.msra.mxu0 0
  %796 = vmatprep.subr.bf16.mxu0 0
  %797 = vmatpush1.bf16.msra.mxu0 0
  %798 = vmatprep.subr.bf16.mxu0 0
  %799 = vmatpush1.bf16.msra.mxu0 0
  %800 = vmatprep.subr.bf16.mxu0 0
  %801 = vmatpush1.bf16.msra.mxu0 0
  %802 = vmatprep.subr.bf16.mxu0 0
  %803 = vmatpush1.bf16.msra.mxu0 0
  %804 = vmatprep.mubr.bf16.mxu0 0
  %805 = vmatmul.mubr.bf16.gmra.mrb[0].mxu0 %v770
  %v806 = vpop.f32.mrb[0].mxu0
  %v807 = vadd.f32 %v756, %v806
  %v808 = vpop.f32.mrb[0].mxu0
  %v809 = vpop.f32.mrb[0].mxu0
  %v810 = vpop.f32.mrb[0].mxu0
  %811 = vdwg.mxu0
  %v812 = vmul.f32 %v807, 0.5
  %v813 = vmul.f32 %v807, 0.044715
  %v814 = vmul.f32 %v813, %v807
  %v815 = vmul.f32 %v814, %v807
  %v816 = vadd.f32 %v807, %v815
  %v817 = vmul.f32 %v816, 0.7978846
  %v818 = vtanh.pop %v817
  %v819 = vadd.f32 %v818, 1.0
  %v820 = vmul.f32 %v812, %v819
  %v821 = vpack.c.bf16 %v820, %v820
  %v822 = vld [vmem:[%s1 + $0xd0] sm:$0xf]
  %v823 = vld [vmem:[%s1 + $0xd4] sm:$0xf]
  %v824 = vld [vmem:[%s1 + $0xd8] sm:$0xf]
  %v825 = vld [vmem:[%s1 + $0xdc] sm:$0xf]
  %v826 = vld [vmem:[%s1 + $0xe0] sm:$0xf]
  %v827 = vld [vmem:[%s1 + $0xe4] sm:$0xf]
  %v828 = vld [vmem:[%s1 + $0xe8] sm:$0xf]
  %v829 = vld [vmem:[%s1 + $0xec] sm:$0xf]
  %v830 = vld [vmem:[%s1 + $0xf0] sm:$0xf]
  %v831 = vld [vmem:[%s1 + $0xf4] sm:$0xf]
  %v832 = vld [vmem:[%s1 + $0xf8] sm:$0xf]
  %v833 = vld [vmem:[%s1 + $0xfc] sm:$0xf]
  %v834 = vld [vmem:[%s1 + $0x100] sm:$0xf]
  %v835 = vld [vmem:[%s1 + $0x104] sm:$0xf]
  %v836 = vld [vmem:[%s1 + $0x108] sm:$0xf]
  %v837 = vld [vmem:[%s1 + $0x10c] sm:$0xf]
  %v838 = vld [vmem:[%s2 + $0x100] sm:$0xff]
  %v839 = vld [vmem:[%s2 + $0x108] sm:$0xff]
  %v840 = vld [vmem:[%s2 + $0x110] sm:$0xff]
  %v841 = vld [vmem:[%s2 + $0x118] sm:$0xff]
  %v842 = vld [vmem:[%s2 + $0x120] sm:$0xff]
  %v843 = vld [vmem:[%s2 + $0x128] sm:$0xff]
  %v844 = vld [vmem:[%s2 + $0x130] sm:$0xff]
  %v845 = vld [vmem:[%s2 + $0x138] sm:$0xff]
  %v846 = vld [vmem:[%s2 + $0x140] sm:$0xff]
  %v847 = vld [vmem:[%s2 + $0x148] sm:$0xff]
  %v848 = vld [vmem:[%s2 + $0x150] sm:$0xff]
  %v849 = vld [vmem:[%s2 + $0x158] sm:$0xff]
  %v850 = vld [vmem:[%s2 + $0x160] sm:$0xff]
  %v851 = vld [vmem:[%s2 + $0x168] sm:$0xff]
  %v852 = vld [vmem:[%s2 + $0x170] sm:$0xff]
  %v853 = vld [vmem:[%s2 + $0x178] sm:$0xff]
  %v854 = vld [vmem:[%s1 + $0x1c0] sm:$0x1]
  %v855 = vunpack.c.l.bf16 %v854
  %v856 = vld [vmem:[%s2 + $0x1b0] sm:$0x11]
  %v857 = vunpack.c.l.bf16 %v856
  %v858 = vunpack.c.h.bf16 %v856
  %v875 = vunpack.c.l.b16 %v822
  %v876 = vunpack.c.l.b16 %v823
  %v877 = vunpack.c.l.b16 %v824
  %v878 = vunpack.c.l.b16 %v825
  %v879 = vunpack.c.l.b16 %v826
  %v880 = vunpack.c.l.b16 %v827
  %v881 = vunpack.c.l.b16 %v828
  %v882 = vunpack.c.l.b16 %v829
  %v883 = vunpack.c.l.b16 %v830
  %v884 = vunpack.c.l.b16 %v831
  %v885 = vunpack.c.l.b16 %v832
  %v886 = vunpack.c.l.b16 %v833
  %v887 = vunpack.c.l.b16 %v834
  %v888 = vunpack.c.l.b16 %v835
  %v889 = vunpack.c.l.b16 %v836
  %v890 = vunpack.c.l.b16 %v837
  %v891 = vpack.c.b16 %v876, %v875
  %v892 = vpack.c.b16 %v878, %v877
  %v893 = vpack.c.b16 %v880, %v879
  %v894 = vpack.c.b16 %v882, %v881
  %v895 = vpack.c.b16 %v884, %v883
  %v896 = vpack.c.b16 %v886, %v885
  %v897 = vpack.c.b16 %v888, %v887
  %v898 = vpack.c.b16 %v890, %v889
  %907 = vmatprep.subr.bf16.mxu0 0
  %908 = vmatpush1.bf16.msra.mxu0 %v891
  %909 = vmatprep.subr.bf16.mxu0 0
  %910 = vmatpush1.bf16.msra.mxu0 %v892
  %911 = vmatprep.subr.bf16.mxu0 0
  %912 = vmatpush1.bf16.msra.mxu0 %v893
  %913 = vmatprep.subr.bf16.mxu0 0
  %914 = vmatpush1.bf16.msra.mxu0 %v894
  %915 = vmatprep.subr.bf16.mxu0 0
  %916 = vmatpush1.bf16.msra.mxu0 %v895
  %917 = vmatprep.subr.bf16.mxu0 0
  %918 = vmatpush1.bf16.msra.mxu0 %v896
  %919 = vmatprep.subr.bf16.mxu0 0
  %920 = vmatpush1.bf16.msra.mxu0 %v897
  %921 = vmatprep.subr.bf16.mxu0 0
  %922 = vmatpush1.bf16.msra.mxu0 %v898
  %923 = vmatprep.subr.bf16.mxu0 0
  %924 = vmatpush1.bf16.msra.mxu0 0
  %925 = vmatprep.subr.bf16.mxu0 0
  %926 = vmatpush1.bf16.msra.mxu0 0
  %927 = vmatprep.subr.bf16.mxu0 0
  %928 = vmatpush1.bf16.msra.mxu0 0
  %929 = vmatprep.subr.bf16.mxu0 0
  %930 = vmatpush1.bf16.msra.mxu0 0
  %931 = vmatprep.subr.bf16.mxu0 0
  %932 = vmatpush1.bf16.msra.mxu0 0
  %933 = vmatprep.subr.bf16.mxu0 0
  %934 = vmatpush1.bf16.msra.mxu0 0
  %935 = vmatprep.subr.bf16.mxu0 0
  %936 = vmatpush1.bf16.msra.mxu0 0
  %937 = vmatprep.subr.bf16.mxu0 0
  %938 = vmatpush1.bf16.msra.mxu0 0
  %939 = vmatprep.mubr.bf16.mxu0 0
  %940 = vmatmul.mubr.bf16.gmra.mrb[0].mxu0 %v821
  %v941 = vpop.f32.mrb[0].mxu0
  %v942 = vadd.f32 0.0, %v941
  %v943 = vpop.f32.mrb[0].mxu0
  %v944 = vpop.f32.mrb[0].mxu0
  %v945 = vpop.f32.mrb[0].mxu0
  %946 = vdwg.mxu0
  %v963 = vunpack.c.l.b16 %v838
  %v964 = vunpack.c.h.b16 %v838
  %v965 = vunpack.c.l.b16 %v839
  %v966 = vunpack.c.h.b16 %v839
  %v967 = vunpack.c.l.b16 %v840
  %v968 = vunpack.c.h.b16 %v840
  %v969 = vunpack.c.l.b16 %v841
  %v970 = vunpack.c.h.b16 %v841
  %v971 = vunpack.c.l.b16 %v842
  %v972 = vunpack.c.h.b16 %v842
  %v973 = vunpack.c.l.b16 %v843
  %v974 = vunpack.c.h.b16 %v843
  %v975 = vunpack.c.l.b16 %v844
  %v976 = vunpack.c.h.b16 %v844
  %v977 = vunpack.c.l.b16 %v845
  %v978 = vunpack.c.h.b16 %v845
  %v979 = vunpack.c.l.b16 %v846
  %v980 = vunpack.c.h.b16 %v846
  %v981 = vunpack.c.l.b16 %v847
  %v982 = vunpack.c.h.b16 %v847
  %v983 = vunpack.c.l.b16 %v848
  %v984 = vunpack.c.h.b16 %v848
  %v985 = vunpack.c.l.b16 %v849
  %v986 = vunpack.c.h.b16 %v849
  %v987 = vunpack.c.l.b16 %v850
  %v988 = vunpack.c.h.b16 %v850
  %v989 = vunpack.c.l.b16 %v851
  %v990 = vunpack.c.h.b16 %v851
  %v991 = vunpack.c.l.b16 %v852
  %v992 = vunpack.c.h.b16 %v852
  %v993 = vunpack.c.l.b16 %v853
  %v994 = vunpack.c.h.b16 %v853
  %v995 = vpack.c.b16 %v965, %v963
  %v996 = vpack.c.b16 %v966, %v964
  %v997 = vpack.c.b16 %v969, %v967
  %v998 = vpack.c.b16 %v970, %v968
  %v999 = vpack.c.b16 %v973, %v971
  %v1000 = vpack.c.b16 %v974, %v972
  %v1001 = vpack.c.b16 %v977, %v975
  %v1002 = vpack.c.b16 %v978, %v976
  %v1003 = vpack.c.b16 %v981, %v979
  %v1004 = vpack.c.b16 %v982, %v980
  %v1005 = vpack.c.b16 %v985, %v983
  %v1006 = vpack.c.b16 %v986, %v984
  %v1007 = vpack.c.b16 %v989, %v987
  %v1008 = vpack.c.b16 %v990, %v988
  %v1009 = vpack.c.b16 %v993, %v991
  %v1010 = vpack.c.b16 %v994, %v992
  %1027 = vmatprep.subr.bf16.mxu0 %v996
  %1028 = vmatpush1.bf16.msra.mxu0 %v995
  %1029 = vmatprep.subr.bf16.mxu0 %v998
  %1030 = vmatpush1.bf16.msra.mxu0 %v997
  %1031 = vmatprep.subr.bf16.mxu0 %v1000
  %1032 = vmatpush1.bf16.msra.mxu0 %v999
  %1033 = vmatprep.subr.bf16.mxu0 %v1002
  %1034 = vmatpush1.bf16.msra.mxu0 %v1001
  %1035 = vmatprep.subr.bf16.mxu0 %v1004
  %1036 = vmatpush1.bf16.msra.mxu0 %v1003
  %1037 = vmatprep.subr.bf16.mxu0 %v1006
  %1038 = vmatpush1.bf16.msra.mxu0 %v1005
  %1039 = vmatprep.subr.bf16.mxu0 %v1008
  %1040 = vmatpush1.bf16.msra.mxu0 %v1007
  %1041 = vmatprep.subr.bf16.mxu0 %v1010
  %1042 = vmatpush1.bf16.msra.mxu0 %v1009
  %1043 = vmatprep.subr.bf16.mxu0 0
  %1044 = vmatpush1.bf16.msra.mxu0 0
  %1045 = vmatprep.subr.bf16.mxu0 0
  %1046 = vmatpush1.bf16.msra.mxu0 0
  %1047 = vmatprep.subr.bf16.mxu0 0
  %1048 = vmatpush1.bf16.msra.mxu0 0
  %1049 = vmatprep.subr.bf16.mxu0 0
  %1050 = vmatpush1.bf16.msra.mxu0 0
  %1051 = vmatprep.subr.bf16.mxu0 0
  %1052 = vmatpush1.bf16.msra.mxu0 0
  %1053 = vmatprep.subr.bf16.mxu0 0
  %1054 = vmatpush1.bf16.msra.mxu0 0
  %1055 = vmatprep.subr.bf16.mxu0 0
  %1056 = vmatpush1.bf16.msra.mxu0 0
  %1057 = vmatprep.subr.bf16.mxu0 0
  %1058 = vmatpush1.bf16.msra.mxu0 0
  %1059 = vmatprep.mubr.bf16.mxu0 0
  %1060 = vmatmul.mubr.bf16.gmra.mrb[0].mxu0 %v821
  %v1061 = vpop.f32.mrb[0].mxu0
  %v1062 = vadd.f32 0.0, %v1061
  %v1063 = vpop.f32.mrb[0].mxu0
  %v1064 = vadd.f32 0.0, %v1063
  %v1065 = vpop.f32.mrb[0].mxu0
  %v1066 = vpop.f32.mrb[0].mxu0
  %1067 = vdwg.mxu0
  %v1072 = vunpack.c.l.b16 %v747
  %v1073 = vunpack.c.h.b16 %v747
  %v1074 = vunpack.c.l.b16 %v748
  %v1075 = vunpack.c.h.b16 %v748
  %v1076 = vunpack.c.l.b16 %v749
  %v1077 = vunpack.c.h.b16 %v749
  %v1078 = vunpack.c.l.b16 %v750
  %v1079 = vunpack.c.h.b16 %v750
  %v1080 = vpack.c.b16 %v1074, %v1072
  %v1081 = vpack.c.b16 %v1075, %v1073
  %v1082 = vpack.c.b16 %v1078, %v1076
  %v1083 = vpack.c.b16 %v1079, %v1077
  %1088 = vmatprep.subr.bf16.mxu0 %v1081
  %1089 = vmatpush1.bf16.msra.mxu0 %v1080
  %1090 = vmatprep.subr.bf16.mxu0 %v1083
  %1091 = vmatpush1.bf16.msra.mxu0 %v1082
  %1092 = vmatprep.subr.bf16.mxu0 0
  %1093 = vmatpush1.bf16.msra.mxu0 0
  %1094 = vmatprep.subr.bf16.mxu0 0
  %1095 = vmatpush1.bf16.msra.mxu0 0
  %1096 = vmatprep.subr.bf16.mxu0 0
  %1097 = vmatpush1.bf16.msra.mxu0 0
  %1098 = vmatprep.subr.bf16.mxu0 0
  %1099 = vmatpush1.bf16.msra.mxu0 0
  %1100 = vmatprep.subr.bf16.mxu0 0
  %1101 = vmatpush1.bf16.msra.mxu0 0
  %1102 = vmatprep.subr.bf16.mxu0 0
  %1103 = vmatpush1.bf16.msra.mxu0 0
  %1104 = vmatprep.subr.bf16.mxu0 0
  %1105 = vmatpush1.bf16.msra.mxu0 0
  %1106 = vmatprep.subr.bf16.mxu0 0
  %1107 = vmatpush1.bf16.msra.mxu0 0
  %1108 = vmatprep.subr.bf16.mxu0 0
  %1109 = vmatpush1.bf16.msra.mxu0 0
  %1110 = vmatprep.subr.bf16.mxu0 0
  %1111 = vmatpush1.bf16.msra.mxu0 0
  %1112 = vmatprep.subr.bf16.mxu0 0
  %1113 = vmatpush1.bf16.msra.mxu0 0
  %1114 = vmatprep.subr.bf16.mxu0 0
  %1115 = vmatpush1.bf16.msra.mxu0 0
  %1116 = vmatprep.subr.bf16.mxu0 0
  %1117 = vmatpush1.bf16.msra.mxu0 0
  %1118 = vmatprep.subr.bf16.mxu0 0
  %1119 = vmatpush1.bf16.msra.mxu0 0
  %1120 = vmatprep.mubr.bf16.mxu0 0
  %1121 = vmatmul.mubr.bf16.gmra.mrb[0].mxu0 %v770
  %v1122 = vpop.f32.mrb[0].mxu0
  %v1123 = vadd.f32 %v1062, %v1122
  %v1124 = vpop.f32.mrb[0].mxu0
  %v1125 = vadd.f32 %v1064, %v1124
  %v1126 = vpop.f32.mrb[0].mxu0
  %v1127 = vpop.f32.mrb[0].mxu0
  %1128 = vdwg.mxu0
  %v1129 = vlaneseq
  %v1130 = vshrl.u32 %v1129, 7
  %v1131 = vsub.s32 0, %v1130
  %v1132 = vrot.slane %v857, %v1131
  %v1133 = vlaneseq
  %v1134 = vshrl.u32 %v1133, 7
  %v1135 = vsub.s32 0, %v1134
  %v1136 = vrot.slane %v858, %v1135
  %v1137 = vadd.f32 %v1123, %v1132
  %v1138 = vadd.f32 %v1125, %v1136
  %v1139 = vmul.f32 %v1137, 0.5
  %v1140 = vmul.f32 %v1138, 0.5
  %v1141 = vmul.f32 %v1137, 0.044715
  %v1142 = vmul.f32 %v1138, 0.044715
  %v1143 = vmul.f32 %v1141, %v1137
  %v1144 = vmul.f32 %v1142, %v1138
  %v1145 = vmul.f32 %v1143, %v1137
  %v1146 = vmul.f32 %v1144, %v1138
  %v1147 = vadd.f32 %v1137, %v1145
  %v1148 = vadd.f32 %v1138, %v1146
  %v1149 = vmul.f32 %v1147, 0.7978846
  %v1150 = vmul.f32 %v1148, 0.7978846
  %v1151 = vtanh.pop %v1149
  %v1152 = vtanh.pop %v1150
  %v1153 = vadd.f32 %v1151, 1.0
  %v1154 = vadd.f32 %v1152, 1.0
  %v1155 = vmul.f32 %v1139, %v1153
  %v1156 = vmul.f32 %v1140, %v1154
  %v1157 = vld [vmem:[%s1 + $0x110] sm:$0xf]
  %v1158 = vld [vmem:[%s1 + $0x114] sm:$0xf]
  %v1159 = vld [vmem:[%s1 + $0x118] sm:$0xf]
  %v1160 = vld [vmem:[%s1 + $0x11c] sm:$0xf]
  %v1161 = vld [vmem:[%s1 + $0x120] sm:$0xf]
  %v1162 = vld [vmem:[%s1 + $0x124] sm:$0xf]
  %v1163 = vld [vmem:[%s1 + $0x128] sm:$0xf]
  %v1164 = vld [vmem:[%s1 + $0x12c] sm:$0xf]
  %v1165 = vld [vmem:[%s1 + $0x130] sm:$0xf]
  %v1166 = vld [vmem:[%s1 + $0x134] sm:$0xf]
  %v1167 = vld [vmem:[%s1 + $0x138] sm:$0xf]
  %v1168 = vld [vmem:[%s1 + $0x13c] sm:$0xf]
  %v1169 = vld [vmem:[%s1 + $0x140] sm:$0xf]
  %v1170 = vld [vmem:[%s1 + $0x144] sm:$0xf]
  %v1171 = vld [vmem:[%s1 + $0x148] sm:$0xf]
  %v1172 = vld [vmem:[%s1 + $0x14c] sm:$0xf]
  %v1173 = vld [vmem:[%s1 + $0x150] sm:$0xf]
  %v1174 = vld [vmem:[%s1 + $0x154] sm:$0xf]
  %v1175 = vld [vmem:[%s1 + $0x158] sm:$0xf]
  %v1176 = vld [vmem:[%s1 + $0x15c] sm:$0xf]
  %v1177 = vld [vmem:[%s1 + $0x160] sm:$0xf]
  %v1178 = vld [vmem:[%s1 + $0x164] sm:$0xf]
  %v1179 = vld [vmem:[%s1 + $0x168] sm:$0xf]
  %v1180 = vld [vmem:[%s1 + $0x16c] sm:$0xf]
  %v1181 = vld [vmem:[%s1 + $0x170] sm:$0xf]
  %v1182 = vld [vmem:[%s1 + $0x174] sm:$0xf]
  %v1183 = vld [vmem:[%s1 + $0x178] sm:$0xf]
  %v1184 = vld [vmem:[%s1 + $0x17c] sm:$0xf]
  %v1185 = vld [vmem:[%s1 + $0x180] sm:$0xf]
  %v1186 = vld [vmem:[%s1 + $0x184] sm:$0xf]
  %v1187 = vld [vmem:[%s1 + $0x188] sm:$0xf]
  %v1188 = vld [vmem:[%s1 + $0x18c] sm:$0xf]
  %v1189 = vld [vmem:[%s1 + $0x1c8] sm:$0x1]
  %v1190 = vunpack.c.l.bf16 %v1189
  %v1191 = vadd.f32 %v741, %v942
  %v1192 = vlaneseq
  %v1193 = vshrl.u32 %v1192, 7
  %v1194 = vsub.s32 0, %v1193
  %v1195 = vrot.slane %v855, %v1194
  %v1196 = vadd.f32 %v1191, %v1195
  %v1197 = vpack.c.bf16 %v1155, %v1155
  %v1198 = vpack.c.bf16 %v1156, %v1156
  %v1231 = vunpack.c.l.b16 %v1157
  %v1232 = vunpack.c.l.b16 %v1158
  %v1233 = vunpack.c.l.b16 %v1159
  %v1234 = vunpack.c.l.b16 %v1160
  %v1235 = vunpack.c.l.b16 %v1161
  %v1236 = vunpack.c.l.b16 %v1162
  %v1237 = vunpack.c.l.b16 %v1163
  %v1238 = vunpack.c.l.b16 %v1164
  %v1239 = vunpack.c.l.b16 %v1165
  %v1240 = vunpack.c.l.b16 %v1166
  %v1241 = vunpack.c.l.b16 %v1167
  %v1242 = vunpack.c.l.b16 %v1168
  %v1243 = vunpack.c.l.b16 %v1169
  %v1244 = vunpack.c.l.b16 %v1170
  %v1245 = vunpack.c.l.b16 %v1171
  %v1246 = vunpack.c.l.b16 %v1172
  %v1247 = vunpack.c.l.b16 %v1173
  %v1248 = vunpack.c.l.b16 %v1174
  %v1249 = vunpack.c.l.b16 %v1175
  %v1250 = vunpack.c.l.b16 %v1176
  %v1251 = vunpack.c.l.b16 %v1177
  %v1252 = vunpack.c.l.b16 %v1178
  %v1253 = vunpack.c.l.b16 %v1179
  %v1254 = vunpack.c.l.b16 %v1180
  %v1255 = vunpack.c.l.b16 %v1181
  %v1256 = vunpack.c.l.b16 %v1182
  %v1257 = vunpack.c.l.b16 %v1183
  %v1258 = vunpack.c.l.b16 %v1184
  %v1259 = vunpack.c.l.b16 %v1185
  %v1260 = vunpack.c.l.b16 %v1186
  %v1261 = vunpack.c.l.b16 %v1187
  %v1262 = vunpack.c.l.b16 %v1188
  %v1263 = vpack.c.b16 %v1232, %v1231
  %v1264 = vpack.c.b16 %v1234, %v1233
  %v1265 = vpack.c.b16 %v1236, %v1235
  %v1266 = vpack.c.b16 %v1238, %v1237
  %v1267 = vpack.c.b16 %v1240, %v1239
  %v1268 = vpack.c.b16 %v1242, %v1241
  %v1269 = vpack.c.b16 %v1244, %v1243
  %v1270 = vpack.c.b16 %v1246, %v1245
  %v1271 = vpack.c.b16 %v1248, %v1247
  %v1272 = vpack.c.b16 %v1250, %v1249
  %v1273 = vpack.c.b16 %v1252, %v1251
  %v1274 = vpack.c.b16 %v1254, %v1253
  %v1275 = vpack.c.b16 %v1256, %v1255
  %v1276 = vpack.c.b16 %v1258, %v1257
  %v1277 = vpack.c.b16 %v1260, %v1259
  %v1278 = vpack.c.b16 %v1262, %v1261
  %1295 = vmatprep.subr.bf16.mxu0 0
  %1296 = vmatpush1.bf16.msra.mxu0 %v1263
  %1297 = vmatprep.subr.bf16.mxu0 0
  %1298 = vmatpush1.bf16.msra.mxu0 %v1264
  %1299 = vmatprep.subr.bf16.mxu0 0
  %1300 = vmatpush1.bf16.msra.mxu0 %v1265
  %1301 = vmatprep.subr.bf16.mxu0 0
  %1302 = vmatpush1.bf16.msra.mxu0 %v1266
  %1303 = vmatprep.subr.bf16.mxu0 0
  %1304 = vmatpush1.bf16.msra.mxu0 %v1267
  %1305 = vmatprep.subr.bf16.mxu0 0
  %1306 = vmatpush1.bf16.msra.mxu0 %v1268
  %1307 = vmatprep.subr.bf16.mxu0 0
  %1308 = vmatpush1.bf16.msra.mxu0 %v1269
  %1309 = vmatprep.subr.bf16.mxu0 0
  %1310 = vmatpush1.bf16.msra.mxu0 %v1270
  %1311 = vmatprep.subr.bf16.mxu0 0
  %1312 = vmatpush1.bf16.msra.mxu0 %v1271
  %1313 = vmatprep.subr.bf16.mxu0 0
  %1314 = vmatpush1.bf16.msra.mxu0 %v1272
  %1315 = vmatprep.subr.bf16.mxu0 0
  %1316 = vmatpush1.bf16.msra.mxu0 %v1273
  %1317 = vmatprep.subr.bf16.mxu0 0
  %1318 = vmatpush1.bf16.msra.mxu0 %v1274
  %1319 = vmatprep.subr.bf16.mxu0 0
  %1320 = vmatpush1.bf16.msra.mxu0 %v1275
  %1321 = vmatprep.subr.bf16.mxu0 0
  %1322 = vmatpush1.bf16.msra.mxu0 %v1276
  %1323 = vmatprep.subr.bf16.mxu0 0
  %1324 = vmatpush1.bf16.msra.mxu0 %v1277
  %1325 = vmatprep.subr.bf16.mxu0 0
  %1326 = vmatpush1.bf16.msra.mxu0 %v1278
  %1327 = vmatprep.mubr.bf16.mxu0 %v1198
  %1328 = vmatmul.mubr.bf16.gmra.mrb[0].mxu0 %v1197
  %v1329 = vpop.f32.mrb[0].mxu0
  %v1330 = vadd.f32 0.0, %v1329
  %v1331 = vpop.f32.mrb[0].mxu0
  %v1332 = vpop.f32.mrb[0].mxu0
  %v1333 = vpop.f32.mrb[0].mxu0
  %1334 = vdwg.mxu0
  %v1335 = vadd.f32 %v1196, %v1330
  %v1336 = vlaneseq
  %v1337 = vshrl.u32 %v1336, 7
  %v1338 = vsub.s32 0, %v1337
  %v1339 = vrot.slane %v1190, %v1338
  %v1340 = vadd.f32 %v1335, %v1339
  %v1341 = vld [vmem:[%s1 + $0x190] sm:$0xf]
  %v1342 = vld [vmem:[%s1 + $0x194] sm:$0xf]
  %v1343 = vld [vmem:[%s1 + $0x198] sm:$0xf]
  %v1344 = vld [vmem:[%s1 + $0x19c] sm:$0xf]
  %v1345 = vld [vmem:[%s1 + $0x1d0] sm:$0x1]
  %v1346 = vunpack.c.l.bf16 %v1345
  %v1347 = vpack.c.bf16 %v1340, %v1340
  %v1348 = vlaneseq
  %v1349 = vshrl.u32 %v1348, 7
  %v1350 = vsub.s32 0, %v1349
  %v1351 = vrot.slane %v1346, %v1350
  %v1356 = vunpack.c.l.b16 %v1341
  %v1357 = vunpack.c.l.b16 %v1342
  %v1358 = vunpack.c.l.b16 %v1343
  %v1359 = vunpack.c.l.b16 %v1344
  %v1360 = vpack.c.b16 %v1357, %v1356
  %v1361 = vpack.c.b16 %v1359, %v1358
  %v1365 = vsel %vm33, %v1347, 0
  %1367 = vmatprep.subr.bf16.mxu0 0
  %1368 = vmatpush1.bf16.msra.mxu0 %v1360
  %1369 = vmatprep.subr.bf16.mxu0 0
  %1370 = vmatpush1.bf16.msra.mxu0 %v1361
  %1371 = vmatprep.subr.bf16.mxu0 0
  %1372 = vmatpush1.bf16.msra.mxu0 0
  %1373 = vmatprep.subr.bf16.mxu0 0
  %1374 = vmatpush1.bf16.msra.mxu0 0
  %1375 = vmatprep.subr.bf16.mxu0 0
  %1376 = vmatpush1.bf16.msra.mxu0 0
  %1377 = vmatprep.subr.bf16.mxu0 0
  %1378 = vmatpush1.bf16.msra.mxu0 0
  %1379 = vmatprep.subr.bf16.mxu0 0
  %1380 = vmatpush1.bf16.msra.mxu0 0
  %1381 = vmatprep.subr.bf16.mxu0 0
  %1382 = vmatpush1.bf16.msra.mxu0 0
  %1383 = vmatprep.subr.bf16.mxu0 0
  %1384 = vmatpush1.bf16.msra.mxu0 0
  %1385 = vmatprep.subr.bf16.mxu0 0
  %1386 = vmatpush1.bf16.msra.mxu0 0
  %1387 = vmatprep.subr.bf16.mxu0 0
  %1388 = vmatpush1.bf16.msra.mxu0 0
  %1389 = vmatprep.subr.bf16.mxu0 0
  %1390 = vmatpush1.bf16.msra.mxu0 0
  %1391 = vmatprep.subr.bf16.mxu0 0
  %1392 = vmatpush1.bf16.msra.mxu0 0
  %1393 = vmatprep.subr.bf16.mxu0 0
  %1394 = vmatpush1.bf16.msra.mxu0 0
  %1395 = vmatprep.subr.bf16.mxu0 0
  %1396 = vmatpush1.bf16.msra.mxu0 0
  %1397 = vmatprep.subr.bf16.mxu0 0
  %1398 = vmatpush1.bf16.msra.mxu0 0
  %1399 = vmatprep.mubr.bf16.mxu0 0
  %1400 = vmatmul.mubr.bf16.gmra.mrb[0].mxu0 %v1365
  %v1401 = vpop.f32.mrb[0].mxu0
  %v1402 = vadd.f32 %v1351, %v1401
  %v1403 = vpop.f32.mrb[0].mxu0
  %v1404 = vpop.f32.mrb[0].mxu0
  %v1405 = vpop.f32.mrb[0].mxu0
  %1406 = vdwg.mxu0
  %vm1407 = vcmask 254976
  %1408 = vst.msk [vmem:[%s3] sm:$0x3] %vm1407, %v1402
  // Predicated region
  $region14: #{tsmixer_forward.1} parent=0 // pred_check
    _
  $region15: #{tsmixer_forward.1} parent=0 // pred_check_branch
    %1410 = sbr.rel (0) target = $region17
  $region16: #{tsmixer_forward.1} parent=0 // pred_region
    _
  $region17: #{tsmixer_forward.1} parent=0 // pred_fallthru
    _
  // Predicated region
  $region18: #{tsmixer_forward.1} parent=0 // pred_check
    _
  $region19: #{tsmixer_forward.1} parent=0 // pred_check_branch
    %1412 = sbr.rel (0) target = $region21
  $region20: #{tsmixer_forward.1} parent=0 // pred_region
    _
  $region21: #{tsmixer_forward.1} parent=0 // pred_fallthru
    _

</llo_original>
